<compile_context>
chip_gen: v7x
topology: tpu7x:2x2x1
jax: 0.10.0
libtpu: 0.0.40
codegen_flags: <defaults>
</compile_context>

<pallas_src>
import math
import functools

import jax
import jax.numpy as jnp
from jax import lax
from jax.experimental import pallas as pl
from jax.experimental.pallas import tpu as pltpu

# ---- hyper-parameters (deterministic, in-script) -----------------------------
MARGIN_S = 64.0
MARGIN_M = 0.5
EASY_MARGIN = False
_COS_M = math.cos(MARGIN_M)
_SIN_M = math.sin(MARGIN_M)
_TH = math.cos(math.pi - MARGIN_M)
_MM = math.sin(math.pi - MARGIN_M) * MARGIN_M
_EPS = 1e-12  # F.normalize eps


# ------------------------------- tiling policy --------------------------------
def _vmem_capacity_bytes():
    """Physical VMEM per TensorCore; conservative 64 MiB fallback (v7x)."""
    try:
        info = pltpu.get_tpu_info()
        cap = getattr(info, "vmem_capacity_bytes", None)
        if cap:
            return int(cap)
    except Exception:
        pass
    return 64 * 1024 * 1024


def _round_up(x, m):
    return ((x + m - 1) // m) * m


def _choose_tile(num_class, emb, batch, tile_n=None):
    """Lane-dense class tile, padded class count and vmem limit (gen-aware)."""
    c128 = _round_up(num_class, 128)
    vmem_cap = _vmem_capacity_bytes()
    # Headroom below the physical capacity for compiler scratch / spills.
    vmem_limit = max(32 * 1024 * 1024, min(int(vmem_cap * 0.75), 96 * 1024 * 1024))
    if tile_n is not None:
        assert tile_n % 128 == 0 and tile_n > 0
        tile = tile_n
    else:
        # Bytes per class column, double-buffered:
        #   4 bf16 weight rows (3 fc + 1 arc), f32 bias(3)+inv(1), 4 f32 output
        #   rows of height B.
        per_col = 2 * (4 * emb * 2 + 4 * 4 + 4 * batch * 4)
        # Grid-invariant blocks (features + labels), still double-buffered by
        # default pipelining.
        fixed = 2 * (4 * batch * emb * 2 + batch * 4)
        budget = int(vmem_limit * 0.85) - fixed
        max_tile = max(128, (max(budget, 128 * per_col) // per_col) // 128 * 128)
        tile = min(c128, max_tile)
        # Prefer >= 2 class tiles so the "parallel" axis can feed both v7x TCs.
        if c128 >= 256:
            tile = min(tile, _round_up(c128 // 2, 128))
    cp = _round_up(num_class, tile)
    return tile, cp, vmem_limit


# ------------------------- fused hybrid-head kernel ---------------------------
def _hybrid_kernel(hit_ref,                              # (nt,)  i32  SMEM (prefetch)
                   fc_fea_ref, fc_w_ref, fc_b_ref,       # (3,B,E)bf16 (3,TN,E)bf16 (3,1,TN)f32
                   fea4n_ref, arc_w_ref, arc_inv_ref,    # (B,E)bf16  (TN,E)bf16   (1,TN)f32
                   label_ref,                            # (B,1) i32
                   fc_o_ref, arc_o_ref):                 # (3,B,TN)f32  (B,TN)f32
    j = pl.program_id(0)
    tn = arc_o_ref.shape[1]

    # ---- three plain Linear heads, batched over the head axis ---------------
    # Weights consumed in native (C, E) layout: A @ B^T contraction (no
    # in-kernel transpose); bf16 operands, f32 accumulation on the MXU.
    out = lax.dot_general(
        fc_fea_ref[...], fc_w_ref[...],
        dimension_numbers=(((2,), (2,)), ((0,), (0,))),
        preferred_element_type=jnp.float32)              # (3, B, TN) f32
    fc_o_ref[...] = out + fc_b_ref[...]                  # bias broadcast over batch

    # ---- Arcface head --------------------------------------------------------
    # Post-dot column scaling by the precomputed inverse weight norms.
    cosine = lax.dot_general(
        fea4n_ref[...], arc_w_ref[...],
        dimension_numbers=(((1,), (1,)), ((), ())),
        preferred_element_type=jnp.float32)              # (B, TN) f32
    cosine = cosine * arc_inv_ref[...]                   # (1, TN) lane scale

    has_label = hit_ref[j] > 0                           # one SMEM read per step

    @pl.when(jnp.logical_not(has_label))
    def _():
        arc_o_ref[...] = MARGIN_S * cosine               # single store (miss tile)

    @pl.when(has_label)
    def _():
        sine = jnp.sqrt(jnp.clip(1.0 - cosine * cosine, 0.0, 1.0))
        phi = cosine * _COS_M - sine * _SIN_M
        if EASY_MARGIN:
            phi = jnp.where(cosine > 0.0, phi, cosine)
        else:
            phi = jnp.where(cosine > _TH, phi, cosine - _MM)
        col = lax.broadcasted_iota(jnp.int32, cosine.shape, 1) + j * tn
        one_hot = col == label_ref[...]                  # (B,TN) vs (B,1) broadcast
        arc_o_ref[...] = MARGIN_S * jnp.where(one_hot, phi, cosine)


def _hybrid_heads(fc_feas, fc_w, fc_b, fea4_n, arc_w, arc_inv, label, tile_n):
    nh, B, E = fc_feas.shape
    C = arc_w.shape[0]
    tile, cp, vmem_limit = _choose_tile(C, E, B, tile_n)
    pad = cp - C
    if pad:
        fc_w = jnp.pad(fc_w, ((0, 0), (0, pad), (0, 0)))
        fc_b = jnp.pad(fc_b, ((0, 0), (0, pad)))
        arc_w = jnp.pad(arc_w, ((0, pad), (0, 0)))
        arc_inv = jnp.pad(arc_inv, ((0, 0), (0, pad)))
    fc_b3 = fc_b.reshape(nh, 1, cp).astype(jnp.float32)
    label_i32 = label.astype(jnp.int32)
    label2 = label_i32.reshape(B, 1)

    nt = cp // tile
    # Per-class-tile "contains some row's label" bitmap -> SMEM prefetch; the
    # kernel gate becomes one scalar read instead of a B-long scalar loop.
    tile_hit = jnp.zeros((nt,), jnp.int32).at[
        jnp.clip(label_i32 // tile, 0, nt - 1)].add(1)

    fc_out, arc_out = pl.pallas_call(
        _hybrid_kernel,
        out_shape=(
            jax.ShapeDtypeStruct((nh, B, cp), jnp.float32),
            jax.ShapeDtypeStruct((B, cp), jnp.float32),
        ),
        grid_spec=pltpu.PrefetchScalarGridSpec(
            num_scalar_prefetch=1,                # hit bitmap -> SMEM
            grid=(nt,),
            in_specs=[
                pl.BlockSpec((nh, B, E), lambda j, hit: (0, 0, 0)),
                pl.BlockSpec((nh, tile, E), lambda j, hit: (0, j, 0)),
                pl.BlockSpec((nh, 1, tile), lambda j, hit: (0, 0, j)),
                pl.BlockSpec((B, E), lambda j, hit: (0, 0)),
                pl.BlockSpec((tile, E), lambda j, hit: (j, 0)),
                pl.BlockSpec((1, tile), lambda j, hit: (0, j)),
                pl.BlockSpec((B, 1), lambda j, hit: (0, 0)),
            ],
            out_specs=(
                pl.BlockSpec((nh, B, tile), lambda j, hit: (0, 0, j)),
                pl.BlockSpec((B, tile), lambda j, hit: (0, j)),
            ),
        ),
        compiler_params=pltpu.CompilerParams(
            dimension_semantics=("parallel",),
            vmem_limit_bytes=vmem_limit,
        ),
    )(tile_hit, fc_feas, fc_w, fc_b3, fea4_n, arc_w, arc_inv, label2)

    if pad:
        fc_out = fc_out[:, :, :C]
        arc_out = arc_out[:, :C]
    return fc_out, arc_out


# ----------------------------- SdHybrid forward --------------------------------
@functools.partial(jax.jit, static_argnames=("tile_n",))
def _sd_hybrid_heads_jit(prep, label, fea1, fea2, fea3, fea4, tile_n=None):
    # Feature streams are tiny vs. the (C, E) weights; casting them to bf16
    # keeps both matmul operands MXU-native.  Normalization / accumulation
    # stays f32.
    fc_feas = jnp.stack([fea1, fea2, fea3], axis=0).astype(jnp.float32)
    fc_feas = fc_feas.astype(jnp.bfloat16)
    f4 = fea4.astype(jnp.float32)
    ss = jnp.sum(f4 * f4, axis=-1, keepdims=True)
    fea4_n = (f4 * lax.rsqrt(jnp.maximum(ss, _EPS * _EPS))).astype(jnp.bfloat16)

    fc_out, arc_out = _hybrid_heads(
        fc_feas, prep["fc_w"], prep["fc_b"], fea4_n, prep["arc_w"],
        prep["arc_inv"], label, tile_n)
    return ([fc_out[0], fc_out[1], fc_out[2], arc_out],
            [fea1, fea2, fea3, fea4])


def sd_hybrid_forward(prep, label, fea1, fea2, fea3, fea4, tile_n=None):
    if label is None:                 # matches SdHybrid.forward(label=None, ...)
        return fea4
    return _sd_hybrid_heads_jit(prep, label, fea1, fea2, fea3, fea4,
                                tile_n=tile_n)


def init_params(key, emb_size, num_class):
    """f32 master parameters (torch layout / init)."""
    ks = jax.random.split(key, 7)
    bound = math.sqrt(6.0 / (emb_size + num_class))          # xavier_uniform
    arc_w = jax.random.uniform(
        ks[0], (num_class, emb_size), jnp.float32, -bound, bound)
    lb = 1.0 / math.sqrt(emb_size)                            # nn.Linear default
    fc_w = jnp.stack([
        jax.random.uniform(ks[1 + 2 * h], (num_class, emb_size), jnp.float32, -lb, lb)
        for h in range(3)], axis=0)
    fc_b = jnp.stack([
        jax.random.uniform(ks[2 + 2 * h], (num_class,), jnp.float32, -lb, lb)
        for h in range(3)], axis=0)
    return dict(arc_w=arc_w, fc_w=fc_w, fc_b=fc_b)


def prepare_params(params):
    """One-time (outside the hot step) bf16 weight copies + Arcface inverse
    weight norms so the kernel streams half the bytes from HBM."""
    arc_w = params["arc_w"].astype(jnp.float32)
    inv = lax.rsqrt(jnp.maximum(jnp.sum(arc_w * arc_w, axis=-1), _EPS * _EPS))
    return dict(
        fc_w=params["fc_w"].astype(jnp.bfloat16),
        fc_b=params["fc_b"].astype(jnp.float32),
        arc_w=params["arc_w"].astype(jnp.bfloat16),
        arc_inv=inv.reshape(1, -1).astype(jnp.float32),
    )


# ------------------------------- demo / checks ---------------------------------
def _ref_forward(params, label, fea1, fea2, fea3, fea4, bf16_weights=True):
    """Pure-JAX reference.  With bf16_weights=True it mirrors the kernel's
    bf16 rounding of the matmul operands (f32 math otherwise identical to the
    torch module)."""
    def rnd(x):
        x = x.astype(jnp.float32)
        return x.astype(jnp.bfloat16).astype(jnp.float32) if bf16_weights else x

    outs = []
    for h, fea in enumerate([fea1, fea2, fea3]):
        outs.append(rnd(fea) @ rnd(params["fc_w"][h]).T + params["fc_b"][h])
    f4 = fea4.astype(jnp.float32)
    fn = f4 * lax.rsqrt(jnp.maximum(jnp.sum(f4 * f4, -1, keepdims=True),
                                    _EPS * _EPS))
    w = params["arc_w"].astype(jnp.float32)
    inv = lax.rsqrt(jnp.maximum(jnp.sum(w * w, -1, keepdims=True), _EPS * _EPS))
    cosine = (rnd(fn) @ rnd(w).T) * inv.T
    sine = jnp.sqrt(jnp.clip(1.0 - cosine ** 2, 0.0, 1.0))
    phi = cosine * _COS_M - sine * _SIN_M
    if EASY_MARGIN:
        phi = jnp.where(cosine > 0.0, phi, cosine)
    else:
        phi = jnp.where(cosine > _TH, phi, cosine - _MM)
    one_hot = jax.nn.one_hot(label, w.shape[0], dtype=jnp.float32)
    outs.append(MARGIN_S * (one_hot * phi + (1.0 - one_hot) * cosine))
    return outs


if __name__ == "__main__":
    # Small shapes; num_class deliberately not a multiple of 128 to exercise
    # the class-dim padding path.
    B, E, C = 8, 128, 250

    key = jax.random.PRNGKey(0)
    kp, k1, k2, k3, k4, kl = jax.random.split(key, 6)
    params = init_params(kp, E, C)
    prep = prepare_params(params)

    fea1 = jax.random.normal(k1, (B, E), jnp.float32)
    fea2 = jax.random.normal(k2, (B, E), jnp.float32)
    fea3 = jax.random.normal(k3, (B, E), jnp.float32)
    fea4 = jax.random.normal(k4, (B, E), jnp.float32)
    # Labels restricted to [0, 120) so with the default 2x128 class tiles the
    # second tile exercises the label-gated "skip" (s*cosine only) path.
    label = jax.random.randint(kl, (B,), 0, 120, jnp.int32)

    ref_bf16 = _ref_forward(params, label, fea1, fea2, fea3, fea4, True)
    ref_f32 = _ref_forward(params, label, fea1, fea2, fea3, fea4, False)

    # 1) default tiling (two class tiles of 128 -> both epilogue branches).
    outs, feas = sd_hybrid_forward(prep, label, fea1, fea2, fea3, fea4)
    jax.block_until_ready(outs)
    jax.block_until_ready(feas)
    for h in range(3):
        assert jnp.allclose(outs[h], ref_bf16[h], atol=2e-3), f"fc{h + 1} mismatch"
        assert jnp.allclose(outs[h], ref_f32[h], atol=5e-2), f"fc{h + 1} far from f32"
    assert jnp.allclose(outs[3], ref_bf16[3], atol=2e-2), "arcface mismatch"
    assert jnp.allclose(outs[3], ref_f32[3], atol=5e-1), "arcface far from f32"

    # 2) single class tile (256 >= C): exercises the one-tile grid path.
    outs2, _ = sd_hybrid_forward(prep, label, fea1, fea2, fea3, fea4, tile_n=256)
    jax.block_until_ready(outs2)
    for h in range(3):
        assert jnp.allclose(outs2[h], ref_bf16[h], atol=2e-3), f"fc{h + 1} (1-tile) mismatch"
    assert jnp.allclose(outs2[3], ref_bf16[3], atol=2e-2), "arcface (1-tile) mismatch"

    # 3) label=None path returns the fourth embedding unchanged.
    emb = sd_hybrid_forward(prep, None, fea1, fea2, fea3, fea4)
    assert jnp.allclose(emb, fea4)

    print("KERNEL_OK")
</pallas_src>

<mosaic_0001>
module attributes {stable_mosaic.version = 11 : i64} {
  func.func @_hybrid_kernel(%arg0: i32, %arg1: memref<2xi32, #tpu.memory_space<smem>>, %arg2: memref<3x8x128xbf16, #tpu.memory_space<vmem>>, %arg3: memref<3x128x128xbf16, #tpu.memory_space<vmem>>, %arg4: memref<3x1x128xf32, #tpu.memory_space<vmem>>, %arg5: memref<8x128xbf16, #tpu.memory_space<vmem>>, %arg6: memref<128x128xbf16, #tpu.memory_space<vmem>>, %arg7: memref<1x128xf32, #tpu.memory_space<vmem>>, %arg8: memref<8x1xi32, #tpu.memory_space<vmem>>, %arg9: memref<3x8x128xf32, #tpu.memory_space<vmem>>, %arg10: memref<8x128xf32, #tpu.memory_space<vmem>>) attributes {dimension_semantics = [#tpu.dimension_semantics<parallel>], iteration_bounds = array<i64: 2>, scalar_prefetch = 1 : i64, scratch_operands = 0 : i64, tpu.core_type = #tpu.core_type<tc>, window_params = [{pipeline_mode = #tpu.pipeline_mode<synchronous>, transform_indices = @transform_0, window_bounds = array<i64: 3, 8, 128>}, {transform_indices = @transform_1, window_bounds = array<i64: 3, 128, 128>}, {transform_indices = @transform_2, window_bounds = array<i64: 3, 1, 128>}, {pipeline_mode = #tpu.pipeline_mode<synchronous>, transform_indices = @transform_3, window_bounds = array<i64: 8, 128>}, {transform_indices = @transform_4, window_bounds = array<i64: 128, 128>}, {transform_indices = @transform_5, window_bounds = array<i64: 1, 128>}, {pipeline_mode = #tpu.pipeline_mode<synchronous>, transform_indices = @transform_6, window_bounds = array<i64: 8, 1>}, {transform_indices = @transform_7, window_bounds = array<i64: 3, 8, 128>}, {transform_indices = @transform_8, window_bounds = array<i64: 8, 128>}]} {
    %c0 = arith.constant 0 : index
    %c0_0 = arith.constant 0 : index
    %c0_1 = arith.constant 0 : index
    %0 = vector.load %arg2[%c0, %c0_0, %c0_1] : memref<3x8x128xbf16, #tpu.memory_space<vmem>>, vector<3x8x128xbf16>
    %c0_2 = arith.constant 0 : index
    %c0_3 = arith.constant 0 : index
    %c0_4 = arith.constant 0 : index
    %1 = vector.load %arg3[%c0_2, %c0_3, %c0_4] : memref<3x128x128xbf16, #tpu.memory_space<vmem>>, vector<3x128x128xbf16>
    %cst = arith.constant dense<0.000000e+00> : vector<3x8x128xf32>
    %2 = tpu.matmul %0, %1, %cst {dimension_numbers = #tpu.dot_dimension_numbers<[2], [2], [1], [1], [0, 0, 0, 1, 1, 1], [0], [0]>} : vector<3x8x128xbf16>, vector<3x128x128xbf16>, vector<3x8x128xf32> -> vector<3x8x128xf32>
    %c0_5 = arith.constant 0 : index
    %c0_6 = arith.constant 0 : index
    %c0_7 = arith.constant 0 : index
    %3 = vector.load %arg4[%c0_5, %c0_6, %c0_7] : memref<3x1x128xf32, #tpu.memory_space<vmem>>, vector<3x1x128xf32>
    %4 = vector.broadcast %3 : vector<3x1x128xf32> to vector<3x8x128xf32>
    %5 = arith.addf %2, %4 : vector<3x8x128xf32>
    %c0_8 = arith.constant 0 : index
    %c0_9 = arith.constant 0 : index
    %c0_10 = arith.constant 0 : index
    %6 = vector.load %arg9[%c0_8, %c0_9, %c0_10] : memref<3x8x128xf32, #tpu.memory_space<vmem>>, vector<3x8x128xf32>
    tpu.vector_store %arg9[%c0_8, %c0_9, %c0_10], %5 {strides = array<i32>} : memref<3x8x128xf32, #tpu.memory_space<vmem>>, vector<3x8x128xf32>,
    %c0_11 = arith.constant 0 : index
    %c0_12 = arith.constant 0 : index
    %7 = vector.load %arg5[%c0_11, %c0_12] : memref<8x128xbf16, #tpu.memory_space<vmem>>, vector<8x128xbf16>
    %c0_13 = arith.constant 0 : index
    %c0_14 = arith.constant 0 : index
    %8 = vector.load %arg6[%c0_13, %c0_14] : memref<128x128xbf16, #tpu.memory_space<vmem>>, vector<128x128xbf16>
    %cst_15 = arith.constant dense<0.000000e+00> : vector<8x128xf32>
    %9 = tpu.matmul %7, %8, %cst_15 {dimension_numbers = #tpu.dot_dimension_numbers<[1], [1], [0], [0], [0, 0, 1, 0], [], []>} : vector<8x128xbf16>, vector<128x128xbf16>, vector<8x128xf32> -> vector<8x128xf32>
    %c0_16 = arith.constant 0 : index
    %c0_17 = arith.constant 0 : index
    %10 = vector.load %arg7[%c0_16, %c0_17] : memref<1x128xf32, #tpu.memory_space<vmem>>, vector<1x128xf32>
    %11 = vector.broadcast %10 : vector<1x128xf32> to vector<8x128xf32>
    %12 = arith.mulf %9, %11 : vector<8x128xf32>
    %13 = arith.index_cast %arg0 : i32 to index
    %14 = memref.load %arg1[%13] : memref<2xi32, #tpu.memory_space<smem>>
    %c0_i32 = arith.constant 0 : i32
    %15 = arith.cmpi sgt, %14, %c0_i32 : i32
    %true = arith.constant true
    %16 = arith.xori %15, %true : i1
    %17 = arith.extui %16 : i1 to i32
    %c0_i32_18 = arith.constant 0 : i32
    %18 = arith.cmpi ne, %17, %c0_i32_18 : i32
    scf.if %18 {
      %cst_20 = arith.constant 6.400000e+01 : f32
      %21 = vector.broadcast %cst_20 : f32 to vector<8x128xf32>
      %22 = arith.mulf %21, %12 : vector<8x128xf32>
      %c0_21 = arith.constant 0 : index
      %c0_22 = arith.constant 0 : index
      %23 = vector.load %arg10[%c0_21, %c0_22] : memref<8x128xf32, #tpu.memory_space<vmem>>, vector<8x128xf32>
      tpu.vector_store %arg10[%c0_21, %c0_22], %22 {strides = array<i32>} : memref<8x128xf32, #tpu.memory_space<vmem>>, vector<8x128xf32>,
    } else {
    }
    %19 = arith.extui %15 : i1 to i32
    %c0_i32_19 = arith.constant 0 : i32
    %20 = arith.cmpi ne, %19, %c0_i32_19 : i32
    scf.if %20 {
      %21 = arith.mulf %12, %12 : vector<8x128xf32>
      %cst_20 = arith.constant 1.000000e+00 : f32
      %22 = vector.broadcast %cst_20 : f32 to vector<8x128xf32>
      %23 = arith.subf %22, %21 : vector<8x128xf32>
      %cst_21 = arith.constant 0.000000e+00 : f32
      %cst_22 = arith.constant 1.000000e+00 : f32
      %24 = vector.broadcast %cst_21 : f32 to vector<8x128xf32>
      %25 = arith.maximumf %24, %23 : vector<8x128xf32>
      %26 = vector.broadcast %cst_22 : f32 to vector<8x128xf32>
      %27 = arith.minimumf %26, %25 : vector<8x128xf32>
      %28 = math.sqrt %27 : vector<8x128xf32>
      %cst_23 = arith.constant 0.87758255 : f32
      %29 = vector.broadcast %cst_23 : f32 to vector<8x128xf32>
      %30 = arith.mulf %12, %29 : vector<8x128xf32>
      %cst_24 = arith.constant 0.47942555 : f32
      %31 = vector.broadcast %cst_24 : f32 to vector<8x128xf32>
      %32 = arith.mulf %28, %31 : vector<8x128xf32>
      %33 = arith.subf %30, %32 : vector<8x128xf32>
      %cst_25 = arith.constant -0.87758255 : f32
      %34 = vector.broadcast %cst_25 : f32 to vector<8x128xf32>
      %35 = arith.cmpf ogt, %12, %34 : vector<8x128xf32>
      %cst_26 = arith.constant 0.239712775 : f32
      %36 = vector.broadcast %cst_26 : f32 to vector<8x128xf32>
      %37 = arith.subf %12, %36 : vector<8x128xf32>
      %38 = arith.select %35, %33, %37 : vector<8x128xi1>, vector<8x128xf32>
      %39 = tpu.iota {dimensions = array<i32: 1>} : vector<8x128xi32>
      %c128_i32 = arith.constant 128 : i32
      %40 = arith.muli %arg0, %c128_i32 : i32
      %41 = vector.broadcast %40 : i32 to vector<8x128xi32>
      %42 = arith.addi %39, %41 : vector<8x128xi32>
      %c0_27 = arith.constant 0 : index
      %c0_28 = arith.constant 0 : index
      %43 = vector.load %arg8[%c0_27, %c0_28] : memref<8x1xi32, #tpu.memory_space<vmem>>, vector<8x1xi32>
      %44 = vector.broadcast %43 : vector<8x1xi32> to vector<8x128xi32>
      %45 = arith.cmpi eq, %42, %44 : vector<8x128xi32>
      %46 = arith.select %45, %38, %12 : vector<8x128xi1>, vector<8x128xf32>
      %cst_29 = arith.constant 6.400000e+01 : f32
      %47 = vector.broadcast %cst_29 : f32 to vector<8x128xf32>
      %48 = arith.mulf %47, %46 : vector<8x128xf32>
      %c0_30 = arith.constant 0 : index
      %c0_31 = arith.constant 0 : index
      %49 = vector.load %arg10[%c0_30, %c0_31] : memref<8x128xf32, #tpu.memory_space<vmem>>, vector<8x128xf32>
      tpu.vector_store %arg10[%c0_30, %c0_31], %48 {strides = array<i32>} : memref<8x128xf32, #tpu.memory_space<vmem>>, vector<8x128xf32>,
    } else {
    }
    return
  }
  func.func @transform_0(%arg0: i32, %arg1: memref<2xi32, #tpu.memory_space<smem>>) -> (i32, i32, i32) {
    %c0_i32 = arith.constant 0 : i32
    %c0_i32_0 = arith.constant 0 : i32
    %c0_i32_1 = arith.constant 0 : i32
    %c0_i32_2 = arith.constant 0 : i32
    return %c0_i32, %c0_i32_0, %c0_i32_1 : i32, i32, i32
  }
  func.func @transform_1(%arg0: i32, %arg1: memref<2xi32, #tpu.memory_space<smem>>) -> (i32, i32, i32) {
    %c0_i32 = arith.constant 0 : i32
    %c0_i32_0 = arith.constant 0 : i32
    %c0_i32_1 = arith.constant 0 : i32
    return %c0_i32, %arg0, %c0_i32_0 : i32, i32, i32
  }
  func.func @transform_2(%arg0: i32, %arg1: memref<2xi32, #tpu.memory_space<smem>>) -> (i32, i32, i32) {
    %c0_i32 = arith.constant 0 : i32
    %c0_i32_0 = arith.constant 0 : i32
    %c0_i32_1 = arith.constant 0 : i32
    return %c0_i32, %c0_i32_0, %arg0 : i32, i32, i32
  }
  func.func @transform_3(%arg0: i32, %arg1: memref<2xi32, #tpu.memory_space<smem>>) -> (i32, i32) {
    %c0_i32 = arith.constant 0 : i32
    %c0_i32_0 = arith.constant 0 : i32
    %c0_i32_1 = arith.constant 0 : i32
    return %c0_i32, %c0_i32_0 : i32, i32
  }
  func.func @transform_4(%arg0: i32, %arg1: memref<2xi32, #tpu.memory_space<smem>>) -> (i32, i32) {
    %c0_i32 = arith.constant 0 : i32
    %c0_i32_0 = arith.constant 0 : i32
    return %arg0, %c0_i32 : i32, i32
  }
  func.func @transform_5(%arg0: i32, %arg1: memref<2xi32, #tpu.memory_space<smem>>) -> (i32, i32) {
    %c0_i32 = arith.constant 0 : i32
    %c0_i32_0 = arith.constant 0 : i32
    return %c0_i32, %arg0 : i32, i32
  }
  func.func @transform_6(%arg0: i32, %arg1: memref<2xi32, #tpu.memory_space<smem>>) -> (i32, i32) {
    %c0_i32 = arith.constant 0 : i32
    %c0_i32_0 = arith.constant 0 : i32
    %c0_i32_1 = arith.constant 0 : i32
    return %c0_i32, %c0_i32_0 : i32, i32
  }
  func.func @transform_7(%arg0: i32, %arg1: memref<2xi32, #tpu.memory_space<smem>>) -> (i32, i32, i32) {
    %c0_i32 = arith.constant 0 : i32
    %c0_i32_0 = arith.constant 0 : i32
    %c0_i32_1 = arith.constant 0 : i32
    return %c0_i32, %c0_i32_0, %arg0 : i32, i32, i32
  }
  func.func @transform_8(%arg0: i32, %arg1: memref<2xi32, #tpu.memory_space<smem>>) -> (i32, i32) {
    %c0_i32 = arith.constant 0 : i32
    %c0_i32_0 = arith.constant 0 : i32
    return %c0_i32, %arg0 : i32, i32
  }
}

</mosaic_0001>

<llo_original>
// kernel: ne.0
$region0: #{ne.0}
  #allocation0 [shape = 's32[1]{0}', space=sflag, size = 0x4, scoped, tag = 'scoped memory for ne.0']
  %s0 = inlined_call_operand.<no memory space> [shape: s32[], index: 0, kind: input, shape index: {}]
  %s1 = inlined_call_operand.vmem [shape: s32[8], index: 1, kind: output, shape index: {}]
  %v2 = vstv %s0
  %3 = vst [vmem:[%s1] sm:$0x1] %v2

// kernel: _sd_hybrid_heads_jit.1
$region0: #{_sd_hybrid_heads_jit.1}
  #allocation0 [shape = 'u32[]', space=smem, size = 0x4, offset = 0x4, fixed_abs, tag = 'smem constant byte address 0x4 - core index']
  #allocation1 [shape = 'u32[144,128]{1,0:T(1,128)}', space=vmem, size = 0x12000, scoped, tag = 'internal scratch']
  #allocation2 [shape = 's32[1]{0}', space=sflag, size = 0x4, scoped, tag = 'scoped memory for _sd_hybrid_heads_jit.1']
  #allocation3 [shape = 'u8[512]{0}', space=smem, size = 0x200, scoped, tag = 'prefetched SMEM operand 0']
  %s0 = inlined_call_operand.vmem [shape: s32[2], index: 0, kind: input, shape index: {}]
  %s1 = inlined_call_operand.vmem [shape: bf16[3,8,128], index: 1, kind: input, shape index: {}]
  %s2 = inlined_call_operand.vmem [shape: bf16[3,256,128], index: 2, kind: input, shape index: {}]
  %s3 = inlined_call_operand.vmem [shape: f32[3,1,256], index: 3, kind: input, shape index: {}]
  %s4 = inlined_call_operand.vmem [shape: bf16[8,128], index: 4, kind: input, shape index: {}]
  %s5 = inlined_call_operand.vmem [shape: bf16[256,128], index: 5, kind: input, shape index: {}]
  %s6 = inlined_call_operand.vmem [shape: f32[1,256], index: 6, kind: input, shape index: {}]
  %s7 = inlined_call_operand.vmem [shape: s32[8,1], index: 7, kind: input, shape index: {}]
  %s8 = inlined_call_operand.vmem [shape: f32[3,8,256], index: 8, kind: output, shape index: {0}]
  %s9 = inlined_call_operand.hbm [shape: f32[8,256], index: 9, kind: output, shape index: {1}]
  %10 = xla_tuple %s8, %s9
  %s11 = sld [smem:[#allocation0]]
  $region186: #{_sd_hybrid_heads_jit.1} parent=0
    _
  %s13 = ssub.s32 1, %s11
  %s14 = scalar_select 0, %s13, %s11
  %s15 = sshll.u32 %s0, 4
  %s16 = int_to_ptr.vmem [resolvable:$true] %s15
  %18 = dma.vmem_to_smem %s16, 16, [#allocation3], [#allocation2]
  %19 = dma.done [#allocation2], 16
  %20 = sfence
  $region1: #{_sd_hybrid_heads_jit.1} parent=0
    #allocation4 [shape = 'u8[196608]{0}', space=vmem, size = 0x30000, scoped, tag = 'input window, operand 2']
    #allocation5 [shape = 'u8[3072]{0}', space=vmem, size = 0xc00, scoped, tag = 'input window, operand 3']
    #allocation6 [shape = 'u8[24576]{0}', space=vmem, size = 0x6000, scoped, tag = 'output window, operand 0']
    #allocation7 [shape = 'u8[8192]{0}', space=vmem, size = 0x2000, scoped, tag = 'output window, operand 1']
    #allocation8 [shape = 's32[2]{0}', space=sflag, size = 0x8, scoped, tag = 'scoped memory for _sd_hybrid_heads_jit.1']
    %21 = vsyncpa [#allocation8], 0
    %s22 = scalar_lea.sflag [#allocation8], 1
    %23 = vsyncpa %s22, 0
    loop: start=0, step=1, limit=4
    $region2: #{_sd_hybrid_heads_jit.1} parent=1 // loop_pre_header
      _
    $region3: #{_sd_hybrid_heads_jit.1} parent=1 // loop_header
      %s25 = sphi 0, %s29
      %p26 = scmp.ge.s32.totalorder %s25, 4
      %s33 = sphi 0, %s33
      %s35 = sphi 0, %s33
      %s36 = sphi 0, %s35
      %s50 = sphi 0, %s36
      %s56 = sphi 0, %s58
      %s59 = sphi 0, %s56
      %s60 = sphi 0, %s59
      %s76 = sphi 0, %s60
      %s82 = sphi 0, %s84
      %s85 = sphi 0, %s82
      %s86 = sphi 0, %s85
      %s102 = sphi 0, %s86
      %s106 = sphi 0, %s106
      %s108 = sphi 0, %s106
      %s109 = sphi 0, %s108
      %s123 = sphi 0, %s109
      %s129 = sphi 0, %s131
      %s132 = sphi 0, %s129
      %s133 = sphi 0, %s132
      %s149 = sphi 0, %s133
      %s155 = sphi 0, %s157
      %s158 = sphi 0, %s155
      %s159 = sphi 0, %s158
      %s175 = sphi 0, %s159
      %s179 = sphi 0, %s179
      %s181 = sphi 0, %s179
      %s182 = sphi 0, %s181
      %s196 = sphi 0, %s182
      %s202 = sphi 0, %s204
      %s205 = sphi 0, %s202
      %s206 = sphi 0, %s205
      %s222 = sphi 0, %s206
      %s228 = sphi 0, %s230
      %s231 = sphi 0, %s228
      %s232 = sphi 0, %s231
      %s248 = sphi 0, %s232
    $region4: #{_sd_hybrid_heads_jit.1} parent=1 // loop_header_branch
      %28 = sbr.rel (%p26) target = $region8
    $region5: #{_sd_hybrid_heads_jit.1} parent=1 // loop_body
      %s30 = ssub.s32 %s25, 1
      %s31 = ssub.s32 %s25, 2
      %s32 = sadd.s32 %s25, 1
      %s34 = sadd.s32 %s33, 1
      %p37 = scmp.eq.s32.totalorder %s25, 1
      %p38 = scmp.ne.s32.totalorder %s33, %s35
      %p39 = scmp.eq.s32.totalorder %s25, 0
      %p40 = por %p38, %p39
      %p41 = scmp.ne.s32.totalorder %s33, %s35
      %p42 = scmp.eq.s32.totalorder %s30, 1
      %p43 = por %p41, %p42
      %p44 = scmp.ne.s32.totalorder %s35, %s36
      %p45 = scmp.eq.s32.totalorder %s30, 0
      %p46 = por %p44, %p45
      %p47 = scmp.ne.s32.totalorder %s35, %s36
      %p48 = scmp.eq.s32.totalorder %s31, 1
      %p49 = por %p47, %p48
      %p51 = scmp.ne.s32.totalorder %s36, %s50
      %p52 = scmp.eq.s32.totalorder %s31, 0
      %p53 = por %p51, %p52
      %s54 = ssub.s32 %s25, %s32
      %p55 = scmp.eq.s32.totalorder %s54, 0
      %s57 = sadd.s32 %s56, 1
      %s58 = scalar_select %p55, %s56, %s57
      %p61 = pneg %p55
      %p62 = scmp.eq.s32.totalorder %s25, 1
      %p63 = por %p61, %p62
      %p64 = scmp.ne.s32.totalorder %s56, %s59
      %p65 = scmp.eq.s32.totalorder %s25, 0
      %p66 = por %p64, %p65
      %p67 = scmp.ne.s32.totalorder %s56, %s59
      %p68 = scmp.eq.s32.totalorder %s30, 1
      %p69 = por %p67, %p68
      %p70 = scmp.ne.s32.totalorder %s59, %s60
      %p71 = scmp.eq.s32.totalorder %s30, 0
      %p72 = por %p70, %p71
      %p73 = scmp.ne.s32.totalorder %s59, %s60
      %p74 = scmp.eq.s32.totalorder %s31, 1
      %p75 = por %p73, %p74
      %p77 = scmp.ne.s32.totalorder %s60, %s76
      %p78 = scmp.eq.s32.totalorder %s31, 0
      %p79 = por %p77, %p78
      %s80 = ssub.s32 %s25, %s32
      %p81 = scmp.eq.s32.totalorder %s80, 0
      %s83 = sadd.s32 %s82, 1
      %s84 = scalar_select %p81, %s82, %s83
      %p87 = pneg %p81
      %p88 = scmp.eq.s32.totalorder %s25, 1
      %p89 = por %p87, %p88
      %p90 = scmp.ne.s32.totalorder %s82, %s85
      %p91 = scmp.eq.s32.totalorder %s25, 0
      %p92 = por %p90, %p91
      %p93 = scmp.ne.s32.totalorder %s82, %s85
      %p94 = scmp.eq.s32.totalorder %s30, 1
      %p95 = por %p93, %p94
      %p96 = scmp.ne.s32.totalorder %s85, %s86
      %p97 = scmp.eq.s32.totalorder %s30, 0
      %p98 = por %p96, %p97
      %p99 = scmp.ne.s32.totalorder %s85, %s86
      %p100 = scmp.eq.s32.totalorder %s31, 1
      %p101 = por %p99, %p100
      %p103 = scmp.ne.s32.totalorder %s86, %s102
      %p104 = scmp.eq.s32.totalorder %s31, 0
      %p105 = por %p103, %p104
      %s107 = sadd.s32 %s106, 1
      %p110 = scmp.eq.s32.totalorder %s25, 1
      %p111 = scmp.ne.s32.totalorder %s106, %s108
      %p112 = scmp.eq.s32.totalorder %s25, 0
      %p113 = por %p111, %p112
      %p114 = scmp.ne.s32.totalorder %s106, %s108
      %p115 = scmp.eq.s32.totalorder %s30, 1
      %p116 = por %p114, %p115
      %p117 = scmp.ne.s32.totalorder %s108, %s109
      %p118 = scmp.eq.s32.totalorder %s30, 0
      %p119 = por %p117, %p118
      %p120 = scmp.ne.s32.totalorder %s108, %s109
      %p121 = scmp.eq.s32.totalorder %s31, 1
      %p122 = por %p120, %p121
      %p124 = scmp.ne.s32.totalorder %s109, %s123
      %p125 = scmp.eq.s32.totalorder %s31, 0
      %p126 = por %p124, %p125
      %s127 = ssub.s32 %s25, %s32
      %p128 = scmp.eq.s32.totalorder %s127, 0
      %s130 = sadd.s32 %s129, 1
      %s131 = scalar_select %p128, %s129, %s130
      %p134 = pneg %p128
      %p135 = scmp.eq.s32.totalorder %s25, 1
      %p136 = por %p134, %p135
      %p137 = scmp.ne.s32.totalorder %s129, %s132
      %p138 = scmp.eq.s32.totalorder %s25, 0
      %p139 = por %p137, %p138
      %p140 = scmp.ne.s32.totalorder %s129, %s132
      %p141 = scmp.eq.s32.totalorder %s30, 1
      %p142 = por %p140, %p141
      %p143 = scmp.ne.s32.totalorder %s132, %s133
      %p144 = scmp.eq.s32.totalorder %s30, 0
      %p145 = por %p143, %p144
      %p146 = scmp.ne.s32.totalorder %s132, %s133
      %p147 = scmp.eq.s32.totalorder %s31, 1
      %p148 = por %p146, %p147
      %p150 = scmp.ne.s32.totalorder %s133, %s149
      %p151 = scmp.eq.s32.totalorder %s31, 0
      %p152 = por %p150, %p151
      %s153 = ssub.s32 %s25, %s32
      %p154 = scmp.eq.s32.totalorder %s153, 0
      %s156 = sadd.s32 %s155, 1
      %s157 = scalar_select %p154, %s155, %s156
      %p160 = pneg %p154
      %p161 = scmp.eq.s32.totalorder %s25, 1
      %p162 = por %p160, %p161
      %p163 = scmp.ne.s32.totalorder %s155, %s158
      %p164 = scmp.eq.s32.totalorder %s25, 0
      %p165 = por %p163, %p164
      %p166 = scmp.ne.s32.totalorder %s155, %s158
      %p167 = scmp.eq.s32.totalorder %s30, 1
      %p168 = por %p166, %p167
      %p169 = scmp.ne.s32.totalorder %s158, %s159
      %p170 = scmp.eq.s32.totalorder %s30, 0
      %p171 = por %p169, %p170
      %p172 = scmp.ne.s32.totalorder %s158, %s159
      %p173 = scmp.eq.s32.totalorder %s31, 1
      %p174 = por %p172, %p173
      %p176 = scmp.ne.s32.totalorder %s159, %s175
      %p177 = scmp.eq.s32.totalorder %s31, 0
      %p178 = por %p176, %p177
      %s180 = sadd.s32 %s179, 1
      %p183 = scmp.eq.s32.totalorder %s25, 1
      %p184 = scmp.ne.s32.totalorder %s179, %s181
      %p185 = scmp.eq.s32.totalorder %s25, 0
      %p186 = por %p184, %p185
      %p187 = scmp.ne.s32.totalorder %s179, %s181
      %p188 = scmp.eq.s32.totalorder %s30, 1
      %p189 = por %p187, %p188
      %p190 = scmp.ne.s32.totalorder %s181, %s182
      %p191 = scmp.eq.s32.totalorder %s30, 0
      %p192 = por %p190, %p191
      %p193 = scmp.ne.s32.totalorder %s181, %s182
      %p194 = scmp.eq.s32.totalorder %s31, 1
      %p195 = por %p193, %p194
      %p197 = scmp.ne.s32.totalorder %s182, %s196
      %p198 = scmp.eq.s32.totalorder %s31, 0
      %p199 = por %p197, %p198
      %s200 = ssub.s32 %s25, %s32
      %p201 = scmp.eq.s32.totalorder %s200, 0
      %s203 = sadd.s32 %s202, 1
      %s204 = scalar_select %p201, %s202, %s203
      %p207 = pneg %p201
      %p208 = scmp.eq.s32.totalorder %s25, 1
      %p209 = por %p207, %p208
      %p210 = scmp.ne.s32.totalorder %s202, %s205
      %p211 = scmp.eq.s32.totalorder %s25, 0
      %p212 = por %p210, %p211
      %p213 = scmp.ne.s32.totalorder %s202, %s205
      %p214 = scmp.eq.s32.totalorder %s30, 1
      %p215 = por %p213, %p214
      %p216 = scmp.ne.s32.totalorder %s205, %s206
      %p217 = scmp.eq.s32.totalorder %s30, 0
      %p218 = por %p216, %p217
      %p219 = scmp.ne.s32.totalorder %s205, %s206
      %p220 = scmp.eq.s32.totalorder %s31, 1
      %p221 = por %p219, %p220
      %p223 = scmp.ne.s32.totalorder %s206, %s222
      %p224 = scmp.eq.s32.totalorder %s31, 0
      %p225 = por %p223, %p224
      %s226 = ssub.s32 %s25, %s32
      %p227 = scmp.eq.s32.totalorder %s226, 0
      %s229 = sadd.s32 %s228, 1
      %s230 = scalar_select %p227, %s228, %s229
      %p233 = pneg %p227
      %p234 = scmp.eq.s32.totalorder %s25, 1
      %p235 = por %p233, %p234
      %p236 = scmp.ne.s32.totalorder %s228, %s231
      %p237 = scmp.eq.s32.totalorder %s25, 0
      %p238 = por %p236, %p237
      %p239 = scmp.ne.s32.totalorder %s228, %s231
      %p240 = scmp.eq.s32.totalorder %s30, 1
      %p241 = por %p239, %p240
      %p242 = scmp.ne.s32.totalorder %s231, %s232
      %p243 = scmp.eq.s32.totalorder %s30, 0
      %p244 = por %p242, %p243
      %p245 = scmp.ne.s32.totalorder %s231, %s232
      %p246 = scmp.eq.s32.totalorder %s31, 1
      %p247 = por %p245, %p246
      %p249 = scmp.ne.s32.totalorder %s232, %s248
      %p250 = scmp.eq.s32.totalorder %s31, 0
      %p251 = por %p249, %p250
      %p252 = scmp.le.s32.totalorder 1, %s25
      %p253 = scmp.lt.s32.totalorder %s25, 3
      %p254 = pnand %p252, %p253
      %p255 = pneg %p254
      // Predicated region
      $region9: #{_sd_hybrid_heads_jit.1} parent=5 // pred_check
        _
      $region10: #{_sd_hybrid_heads_jit.1} parent=5 // pred_check_branch
        %257 = sbr.rel (%p254) target = $region12
      $region11: #{_sd_hybrid_heads_jit.1} parent=5 // pred_region
        %s258 = ssub.s32 %s25, 1
        // Predicated region
        $region13: #{_sd_hybrid_heads_jit.1} parent=11 // pred_check
          %p259 = pneg %p46
        $region14: #{_sd_hybrid_heads_jit.1} parent=11 // pred_check_branch
          %261 = sbr.rel (%p259) target = $region16
        $region15: #{_sd_hybrid_heads_jit.1} parent=11 // pred_region
          _
        $region16: #{_sd_hybrid_heads_jit.1} parent=11 // pred_fallthru
          _
        // Predicated region
        $region17: #{_sd_hybrid_heads_jit.1} parent=11 // pred_check
          %p262 = pneg %p119
        $region18: #{_sd_hybrid_heads_jit.1} parent=11 // pred_check_branch
          %264 = sbr.rel (%p262) target = $region20
        $region19: #{_sd_hybrid_heads_jit.1} parent=11 // pred_region
          _
        $region20: #{_sd_hybrid_heads_jit.1} parent=11 // pred_fallthru
          _
        // Predicated region
        $region21: #{_sd_hybrid_heads_jit.1} parent=11 // pred_check
          %p265 = pneg %p192
        $region22: #{_sd_hybrid_heads_jit.1} parent=11 // pred_check_branch
          %267 = sbr.rel (%p265) target = $region24
        $region23: #{_sd_hybrid_heads_jit.1} parent=11 // pred_region
          _
        $region24: #{_sd_hybrid_heads_jit.1} parent=11 // pred_fallthru
          _
      $region12: #{_sd_hybrid_heads_jit.1} parent=5 // pred_fallthru
        _
      %p268 = scmp.lt.s32.totalorder %s25, 2
      // Predicated region
      $region25: #{_sd_hybrid_heads_jit.1} parent=5 // pred_check
        %p269 = pneg %p268
      $region26: #{_sd_hybrid_heads_jit.1} parent=5 // pred_check_branch
        %271 = sbr.rel (%p269) target = $region28
      $region27: #{_sd_hybrid_heads_jit.1} parent=5 // pred_region
        // Predicated region
        $region29: #{_sd_hybrid_heads_jit.1} parent=27 // pred_check
          %p272 = pneg %p66
        $region30: #{_sd_hybrid_heads_jit.1} parent=27 // pred_check_branch
          %274 = sbr.rel (%p272) target = $region32
        $region31: #{_sd_hybrid_heads_jit.1} parent=27 // pred_region
          %s275 = sand.u32 %s56, 1
          %s276 = sand.u32 %s56, 1
          %s277 = smul.addr %s276, 192
          %s278 = scalar_lea.vmem [#allocation4], %s277
          %s279 = smul.u32 16, %s25
          %s280 = smul.addr %s279, 4
          %s281 = scalar_lea.vmem %s2, %s280
          // Predicated region
          $region33: #{_sd_hybrid_heads_jit.1} parent=31 // pred_check
            _
          $region34: #{_sd_hybrid_heads_jit.1} parent=31 // pred_check_branch
            %283 = sbr.rel (0) target = $region36
          $region35: #{_sd_hybrid_heads_jit.1} parent=31 // pred_region
            // Predicated region
            $region37: #{_sd_hybrid_heads_jit.1} parent=35 // pred_check
              _
            $region38: #{_sd_hybrid_heads_jit.1} parent=35 // pred_check_branch
              %285 = sbr.rel target = $region40
            $region39: #{_sd_hybrid_heads_jit.1} parent=35 // pred_region
              // Predicated region
              $region52: #{_sd_hybrid_heads_jit.1} parent=39 // pred_check
                _
              $region53: #{_sd_hybrid_heads_jit.1} parent=39 // pred_check_branch
                %394 = sbr.rel (0) target = $region55
              $region54: #{_sd_hybrid_heads_jit.1} parent=39 // pred_region
                loop: start=0, step=1, limit=1
                $region56: #{_sd_hybrid_heads_jit.1} parent=54 // loop_pre_header
                  _
                $region57: #{_sd_hybrid_heads_jit.1} parent=54 // loop_header
                  %s396 = sphi 0, %s400
                  %p397 = scmp.ge.s32.totalorder %s396, 1
                  %s401 = sphi %s281, %s281
                  %s402 = sphi %s278, %s278
                $region58: #{_sd_hybrid_heads_jit.1} parent=54 // loop_header_branch
                  %399 = sbr.rel (%p397) target = $region62
                $region59: #{_sd_hybrid_heads_jit.1} parent=54 // loop_body
                  _
                $region60: #{_sd_hybrid_heads_jit.1} parent=54 // loop_footer
                  %s400 = sadd.s32 1, %s396
                $region61: #{_sd_hybrid_heads_jit.1} parent=54 // loop_footer_branch
                  %395 = sbr.rel target = $region57
                $region62: #{_sd_hybrid_heads_jit.1} parent=54 // loop_exit
                  _
                loop: start=0, step=1, limit=1
                $region63: #{_sd_hybrid_heads_jit.1} parent=54 // loop_pre_header
                  _
                $region64: #{_sd_hybrid_heads_jit.1} parent=54 // loop_header
                  %s405 = sphi 0, %s409
                  %p406 = scmp.ge.s32.totalorder %s405, 1
                  %s410 = sphi %s281, %s281
                  %s411 = sphi %s278, %s278
                $region65: #{_sd_hybrid_heads_jit.1} parent=54 // loop_header_branch
                  %408 = sbr.rel (%p406) target = $region69
                $region66: #{_sd_hybrid_heads_jit.1} parent=54 // loop_body
                  %v412 = vld [vmem:[%s410] sm:$0xf]
                  %413 = vst [vmem:[%s411] sm:$0xf] %v412
                  %v414 = vld [vmem:[%s410 + $0x4] sm:$0xf]
                  %415 = vst [vmem:[%s411 + $0x4] sm:$0xf] %v414
                  %v416 = vld [vmem:[%s410 + $0x8] sm:$0xf]
                  %417 = vst [vmem:[%s411 + $0x8] sm:$0xf] %v416
                  %v418 = vld [vmem:[%s410 + $0xc] sm:$0xf]
                  %419 = vst [vmem:[%s411 + $0xc] sm:$0xf] %v418
                  %v420 = vld [vmem:[%s410 + $0x10] sm:$0xf]
                  %421 = vst [vmem:[%s411 + $0x10] sm:$0xf] %v420
                  %v422 = vld [vmem:[%s410 + $0x14] sm:$0xf]
                  %423 = vst [vmem:[%s411 + $0x14] sm:$0xf] %v422
                  %v424 = vld [vmem:[%s410 + $0x18] sm:$0xf]
                  %425 = vst [vmem:[%s411 + $0x18] sm:$0xf] %v424
                  %v426 = vld [vmem:[%s410 + $0x1c] sm:$0xf]
                  %427 = vst [vmem:[%s411 + $0x1c] sm:$0xf] %v426
                  %v428 = vld [vmem:[%s410 + $0x20] sm:$0xf]
                  %429 = vst [vmem:[%s411 + $0x20] sm:$0xf] %v428
                  %v430 = vld [vmem:[%s410 + $0x24] sm:$0xf]
                  %431 = vst [vmem:[%s411 + $0x24] sm:$0xf] %v430
                  %v432 = vld [vmem:[%s410 + $0x28] sm:$0xf]
                  %433 = vst [vmem:[%s411 + $0x28] sm:$0xf] %v432
                  %v434 = vld [vmem:[%s410 + $0x2c] sm:$0xf]
                  %435 = vst [vmem:[%s411 + $0x2c] sm:$0xf] %v434
                  %v436 = vld [vmem:[%s410 + $0x30] sm:$0xf]
                  %437 = vst [vmem:[%s411 + $0x30] sm:$0xf] %v436
                  %v438 = vld [vmem:[%s410 + $0x34] sm:$0xf]
                  %439 = vst [vmem:[%s411 + $0x34] sm:$0xf] %v438
                  %v440 = vld [vmem:[%s410 + $0x38] sm:$0xf]
                  %441 = vst [vmem:[%s411 + $0x38] sm:$0xf] %v440
                  %v442 = vld [vmem:[%s410 + $0x3c] sm:$0xf]
                  %443 = vst [vmem:[%s411 + $0x3c] sm:$0xf] %v442
                  %v444 = vld [vmem:[%s410 + $0x80] sm:$0xf]
                  %445 = vst [vmem:[%s411 + $0x40] sm:$0xf] %v444
                  %v446 = vld [vmem:[%s410 + $0x84] sm:$0xf]
                  %447 = vst [vmem:[%s411 + $0x44] sm:$0xf] %v446
                  %v448 = vld [vmem:[%s410 + $0x88] sm:$0xf]
                  %449 = vst [vmem:[%s411 + $0x48] sm:$0xf] %v448
                  %v450 = vld [vmem:[%s410 + $0x8c] sm:$0xf]
                  %451 = vst [vmem:[%s411 + $0x4c] sm:$0xf] %v450
                  %v452 = vld [vmem:[%s410 + $0x90] sm:$0xf]
                  %453 = vst [vmem:[%s411 + $0x50] sm:$0xf] %v452
                  %v454 = vld [vmem:[%s410 + $0x94] sm:$0xf]
                  %455 = vst [vmem:[%s411 + $0x54] sm:$0xf] %v454
                  %v456 = vld [vmem:[%s410 + $0x98] sm:$0xf]
                  %457 = vst [vmem:[%s411 + $0x58] sm:$0xf] %v456
                  %v458 = vld [vmem:[%s410 + $0x9c] sm:$0xf]
                  %459 = vst [vmem:[%s411 + $0x5c] sm:$0xf] %v458
                  %v460 = vld [vmem:[%s410 + $0xa0] sm:$0xf]
                  %461 = vst [vmem:[%s411 + $0x60] sm:$0xf] %v460
                  %v462 = vld [vmem:[%s410 + $0xa4] sm:$0xf]
                  %463 = vst [vmem:[%s411 + $0x64] sm:$0xf] %v462
                  %v464 = vld [vmem:[%s410 + $0xa8] sm:$0xf]
                  %465 = vst [vmem:[%s411 + $0x68] sm:$0xf] %v464
                  %v466 = vld [vmem:[%s410 + $0xac] sm:$0xf]
                  %467 = vst [vmem:[%s411 + $0x6c] sm:$0xf] %v466
                  %v468 = vld [vmem:[%s410 + $0xb0] sm:$0xf]
                  %469 = vst [vmem:[%s411 + $0x70] sm:$0xf] %v468
                  %v470 = vld [vmem:[%s410 + $0xb4] sm:$0xf]
                  %471 = vst [vmem:[%s411 + $0x74] sm:$0xf] %v470
                  %v472 = vld [vmem:[%s410 + $0xb8] sm:$0xf]
                  %473 = vst [vmem:[%s411 + $0x78] sm:$0xf] %v472
                  %v474 = vld [vmem:[%s410 + $0xbc] sm:$0xf]
                  %475 = vst [vmem:[%s411 + $0x7c] sm:$0xf] %v474
                  %v476 = vld [vmem:[%s410 + $0x100] sm:$0xf]
                  %477 = vst [vmem:[%s411 + $0x80] sm:$0xf] %v476
                  %v478 = vld [vmem:[%s410 + $0x104] sm:$0xf]
                  %479 = vst [vmem:[%s411 + $0x84] sm:$0xf] %v478
                  %v480 = vld [vmem:[%s410 + $0x108] sm:$0xf]
                  %481 = vst [vmem:[%s411 + $0x88] sm:$0xf] %v480
                  %v482 = vld [vmem:[%s410 + $0x10c] sm:$0xf]
                  %483 = vst [vmem:[%s411 + $0x8c] sm:$0xf] %v482
                  %v484 = vld [vmem:[%s410 + $0x110] sm:$0xf]
                  %485 = vst [vmem:[%s411 + $0x90] sm:$0xf] %v484
                  %v486 = vld [vmem:[%s410 + $0x114] sm:$0xf]
                  %487 = vst [vmem:[%s411 + $0x94] sm:$0xf] %v486
                  %v488 = vld [vmem:[%s410 + $0x118] sm:$0xf]
                  %489 = vst [vmem:[%s411 + $0x98] sm:$0xf] %v488
                  %v490 = vld [vmem:[%s410 + $0x11c] sm:$0xf]
                  %491 = vst [vmem:[%s411 + $0x9c] sm:$0xf] %v490
                  %v492 = vld [vmem:[%s410 + $0x120] sm:$0xf]
                  %493 = vst [vmem:[%s411 + $0xa0] sm:$0xf] %v492
                  %v494 = vld [vmem:[%s410 + $0x124] sm:$0xf]
                  %495 = vst [vmem:[%s411 + $0xa4] sm:$0xf] %v494
                  %v496 = vld [vmem:[%s410 + $0x128] sm:$0xf]
                  %497 = vst [vmem:[%s411 + $0xa8] sm:$0xf] %v496
                  %v498 = vld [vmem:[%s410 + $0x12c] sm:$0xf]
                  %499 = vst [vmem:[%s411 + $0xac] sm:$0xf] %v498
                  %v500 = vld [vmem:[%s410 + $0x130] sm:$0xf]
                  %501 = vst [vmem:[%s411 + $0xb0] sm:$0xf] %v500
                  %v502 = vld [vmem:[%s410 + $0x134] sm:$0xf]
                  %503 = vst [vmem:[%s411 + $0xb4] sm:$0xf] %v502
                  %v504 = vld [vmem:[%s410 + $0x138] sm:$0xf]
                  %505 = vst [vmem:[%s411 + $0xb8] sm:$0xf] %v504
                  %v506 = vld [vmem:[%s410 + $0x13c] sm:$0xf]
                  %507 = vst [vmem:[%s411 + $0xbc] sm:$0xf] %v506
                $region67: #{_sd_hybrid_heads_jit.1} parent=54 // loop_footer
                  %s409 = sadd.s32 1, %s405
                $region68: #{_sd_hybrid_heads_jit.1} parent=54 // loop_footer_branch
                  %404 = sbr.rel target = $region64
                $region69: #{_sd_hybrid_heads_jit.1} parent=54 // loop_exit
                  _
              $region55: #{_sd_hybrid_heads_jit.1} parent=39 // pred_fallthru
                _
            $region40: #{_sd_hybrid_heads_jit.1} parent=35 // pred_fallthru
              _
            // Predicated region
            $region41: #{_sd_hybrid_heads_jit.1} parent=35 // pred_check
              _
            $region42: #{_sd_hybrid_heads_jit.1} parent=35 // pred_check_branch
              %287 = sbr.rel (0) target = $region44
            $region43: #{_sd_hybrid_heads_jit.1} parent=35 // pred_region
              loop: start=0, step=1, limit=1
              $region45: #{_sd_hybrid_heads_jit.1} parent=43 // loop_pre_header
                _
              $region46: #{_sd_hybrid_heads_jit.1} parent=43 // loop_header
                %s290 = sphi 0, %s294
                %p291 = scmp.ge.s32.totalorder %s290, 1
                %s295 = sphi %s281, %s281
                %s296 = sphi %s278, %s278
              $region47: #{_sd_hybrid_heads_jit.1} parent=43 // loop_header_branch
                %293 = sbr.rel (%p291) target = $region51
              $region48: #{_sd_hybrid_heads_jit.1} parent=43 // loop_body
                %v297 = vld [vmem:[%s295] sm:$0xf]
                %298 = vst [vmem:[%s296] sm:$0xf] %v297
                %v299 = vld [vmem:[%s295 + $0x4] sm:$0xf]
                %300 = vst [vmem:[%s296 + $0x4] sm:$0xf] %v299
                %v301 = vld [vmem:[%s295 + $0x8] sm:$0xf]
                %302 = vst [vmem:[%s296 + $0x8] sm:$0xf] %v301
                %v303 = vld [vmem:[%s295 + $0xc] sm:$0xf]
                %304 = vst [vmem:[%s296 + $0xc] sm:$0xf] %v303
                %v305 = vld [vmem:[%s295 + $0x10] sm:$0xf]
                %306 = vst [vmem:[%s296 + $0x10] sm:$0xf] %v305
                %v307 = vld [vmem:[%s295 + $0x14] sm:$0xf]
                %308 = vst [vmem:[%s296 + $0x14] sm:$0xf] %v307
                %v309 = vld [vmem:[%s295 + $0x18] sm:$0xf]
                %310 = vst [vmem:[%s296 + $0x18] sm:$0xf] %v309
                %v311 = vld [vmem:[%s295 + $0x1c] sm:$0xf]
                %312 = vst [vmem:[%s296 + $0x1c] sm:$0xf] %v311
                %v313 = vld [vmem:[%s295 + $0x20] sm:$0xf]
                %314 = vst [vmem:[%s296 + $0x20] sm:$0xf] %v313
                %v315 = vld [vmem:[%s295 + $0x24] sm:$0xf]
                %316 = vst [vmem:[%s296 + $0x24] sm:$0xf] %v315
                %v317 = vld [vmem:[%s295 + $0x28] sm:$0xf]
                %318 = vst [vmem:[%s296 + $0x28] sm:$0xf] %v317
                %v319 = vld [vmem:[%s295 + $0x2c] sm:$0xf]
                %320 = vst [vmem:[%s296 + $0x2c] sm:$0xf] %v319
                %v321 = vld [vmem:[%s295 + $0x30] sm:$0xf]
                %322 = vst [vmem:[%s296 + $0x30] sm:$0xf] %v321
                %v323 = vld [vmem:[%s295 + $0x34] sm:$0xf]
                %324 = vst [vmem:[%s296 + $0x34] sm:$0xf] %v323
                %v325 = vld [vmem:[%s295 + $0x38] sm:$0xf]
                %326 = vst [vmem:[%s296 + $0x38] sm:$0xf] %v325
                %v327 = vld [vmem:[%s295 + $0x3c] sm:$0xf]
                %328 = vst [vmem:[%s296 + $0x3c] sm:$0xf] %v327
                %v329 = vld [vmem:[%s295 + $0x80] sm:$0xf]
                %330 = vst [vmem:[%s296 + $0x40] sm:$0xf] %v329
                %v331 = vld [vmem:[%s295 + $0x84] sm:$0xf]
                %332 = vst [vmem:[%s296 + $0x44] sm:$0xf] %v331
                %v333 = vld [vmem:[%s295 + $0x88] sm:$0xf]
                %334 = vst [vmem:[%s296 + $0x48] sm:$0xf] %v333
                %v335 = vld [vmem:[%s295 + $0x8c] sm:$0xf]
                %336 = vst [vmem:[%s296 + $0x4c] sm:$0xf] %v335
                %v337 = vld [vmem:[%s295 + $0x90] sm:$0xf]
                %338 = vst [vmem:[%s296 + $0x50] sm:$0xf] %v337
                %v339 = vld [vmem:[%s295 + $0x94] sm:$0xf]
                %340 = vst [vmem:[%s296 + $0x54] sm:$0xf] %v339
                %v341 = vld [vmem:[%s295 + $0x98] sm:$0xf]
                %342 = vst [vmem:[%s296 + $0x58] sm:$0xf] %v341
                %v343 = vld [vmem:[%s295 + $0x9c] sm:$0xf]
                %344 = vst [vmem:[%s296 + $0x5c] sm:$0xf] %v343
                %v345 = vld [vmem:[%s295 + $0xa0] sm:$0xf]
                %346 = vst [vmem:[%s296 + $0x60] sm:$0xf] %v345
                %v347 = vld [vmem:[%s295 + $0xa4] sm:$0xf]
                %348 = vst [vmem:[%s296 + $0x64] sm:$0xf] %v347
                %v349 = vld [vmem:[%s295 + $0xa8] sm:$0xf]
                %350 = vst [vmem:[%s296 + $0x68] sm:$0xf] %v349
                %v351 = vld [vmem:[%s295 + $0xac] sm:$0xf]
                %352 = vst [vmem:[%s296 + $0x6c] sm:$0xf] %v351
                %v353 = vld [vmem:[%s295 + $0xb0] sm:$0xf]
                %354 = vst [vmem:[%s296 + $0x70] sm:$0xf] %v353
                %v355 = vld [vmem:[%s295 + $0xb4] sm:$0xf]
                %356 = vst [vmem:[%s296 + $0x74] sm:$0xf] %v355
                %v357 = vld [vmem:[%s295 + $0xb8] sm:$0xf]
                %358 = vst [vmem:[%s296 + $0x78] sm:$0xf] %v357
                %v359 = vld [vmem:[%s295 + $0xbc] sm:$0xf]
                %360 = vst [vmem:[%s296 + $0x7c] sm:$0xf] %v359
                %v361 = vld [vmem:[%s295 + $0x100] sm:$0xf]
                %362 = vst [vmem:[%s296 + $0x80] sm:$0xf] %v361
                %v363 = vld [vmem:[%s295 + $0x104] sm:$0xf]
                %364 = vst [vmem:[%s296 + $0x84] sm:$0xf] %v363
                %v365 = vld [vmem:[%s295 + $0x108] sm:$0xf]
                %366 = vst [vmem:[%s296 + $0x88] sm:$0xf] %v365
                %v367 = vld [vmem:[%s295 + $0x10c] sm:$0xf]
                %368 = vst [vmem:[%s296 + $0x8c] sm:$0xf] %v367
                %v369 = vld [vmem:[%s295 + $0x110] sm:$0xf]
                %370 = vst [vmem:[%s296 + $0x90] sm:$0xf] %v369
                %v371 = vld [vmem:[%s295 + $0x114] sm:$0xf]
                %372 = vst [vmem:[%s296 + $0x94] sm:$0xf] %v371
                %v373 = vld [vmem:[%s295 + $0x118] sm:$0xf]
                %374 = vst [vmem:[%s296 + $0x98] sm:$0xf] %v373
                %v375 = vld [vmem:[%s295 + $0x11c] sm:$0xf]
                %376 = vst [vmem:[%s296 + $0x9c] sm:$0xf] %v375
                %v377 = vld [vmem:[%s295 + $0x120] sm:$0xf]
                %378 = vst [vmem:[%s296 + $0xa0] sm:$0xf] %v377
                %v379 = vld [vmem:[%s295 + $0x124] sm:$0xf]
                %380 = vst [vmem:[%s296 + $0xa4] sm:$0xf] %v379
                %v381 = vld [vmem:[%s295 + $0x128] sm:$0xf]
                %382 = vst [vmem:[%s296 + $0xa8] sm:$0xf] %v381
                %v383 = vld [vmem:[%s295 + $0x12c] sm:$0xf]
                %384 = vst [vmem:[%s296 + $0xac] sm:$0xf] %v383
                %v385 = vld [vmem:[%s295 + $0x130] sm:$0xf]
                %386 = vst [vmem:[%s296 + $0xb0] sm:$0xf] %v385
                %v387 = vld [vmem:[%s295 + $0x134] sm:$0xf]
                %388 = vst [vmem:[%s296 + $0xb4] sm:$0xf] %v387
                %v389 = vld [vmem:[%s295 + $0x138] sm:$0xf]
                %390 = vst [vmem:[%s296 + $0xb8] sm:$0xf] %v389
                %v391 = vld [vmem:[%s295 + $0x13c] sm:$0xf]
                %392 = vst [vmem:[%s296 + $0xbc] sm:$0xf] %v391
              $region49: #{_sd_hybrid_heads_jit.1} parent=43 // loop_footer
                %s294 = sadd.s32 1, %s290
              $region50: #{_sd_hybrid_heads_jit.1} parent=43 // loop_footer_branch
                %289 = sbr.rel target = $region46
              $region51: #{_sd_hybrid_heads_jit.1} parent=43 // loop_exit
                _
            $region44: #{_sd_hybrid_heads_jit.1} parent=35 // pred_fallthru
              _
          $region36: #{_sd_hybrid_heads_jit.1} parent=31 // pred_fallthru
            _
          %508 = vnop
        $region32: #{_sd_hybrid_heads_jit.1} parent=27 // pred_fallthru
          _
        // Predicated region
        $region70: #{_sd_hybrid_heads_jit.1} parent=27 // pred_check
          %p509 = pneg %p92
        $region71: #{_sd_hybrid_heads_jit.1} parent=27 // pred_check_branch
          %511 = sbr.rel (%p509) target = $region73
        $region72: #{_sd_hybrid_heads_jit.1} parent=27 // pred_region
          %s512 = sand.u32 %s82, 1
          %s513 = sand.u32 %s82, 1
          %s514 = smul.addr %s513, 3
          %s515 = scalar_lea.vmem [#allocation5], %s514
          %s516 = scalar_lea.vmem %s3, %s25
          // Predicated region
          $region74: #{_sd_hybrid_heads_jit.1} parent=72 // pred_check
            _
          $region75: #{_sd_hybrid_heads_jit.1} parent=72 // pred_check_branch
            %518 = sbr.rel (0) target = $region77
          $region76: #{_sd_hybrid_heads_jit.1} parent=72 // pred_region
            // Predicated region
            $region78: #{_sd_hybrid_heads_jit.1} parent=76 // pred_check
              _
            $region79: #{_sd_hybrid_heads_jit.1} parent=76 // pred_check_branch
              %520 = sbr.rel target = $region81
            $region80: #{_sd_hybrid_heads_jit.1} parent=76 // pred_region
              // Predicated region
              $region93: #{_sd_hybrid_heads_jit.1} parent=80 // pred_check
                _
              $region94: #{_sd_hybrid_heads_jit.1} parent=80 // pred_check_branch
                %539 = sbr.rel (0) target = $region96
              $region95: #{_sd_hybrid_heads_jit.1} parent=80 // pred_region
                loop: start=0, step=1, limit=1
                $region97: #{_sd_hybrid_heads_jit.1} parent=95 // loop_pre_header
                  _
                $region98: #{_sd_hybrid_heads_jit.1} parent=95 // loop_header
                  %s542 = sphi 0, %s546
                  %p543 = scmp.ge.s32.totalorder %s542, 1
                  %s547 = sphi %s516, %s516
                  %s548 = sphi %s515, %s515
                $region99: #{_sd_hybrid_heads_jit.1} parent=95 // loop_header_branch
                  %545 = sbr.rel (%p543) target = $region103
                $region100: #{_sd_hybrid_heads_jit.1} parent=95 // loop_body
                  %v549 = vld [vmem:[%s547] sm:$0x1]
                  %550 = vst [vmem:[%s548] sm:$0x1] %v549
                  %v551 = vld [vmem:[%s547 + $0x2] sm:$0x1]
                  %552 = vst [vmem:[%s548 + $0x1] sm:$0x1] %v551
                  %v553 = vld [vmem:[%s547 + $0x4] sm:$0x1]
                  %554 = vst [vmem:[%s548 + $0x2] sm:$0x1] %v553
                $region101: #{_sd_hybrid_heads_jit.1} parent=95 // loop_footer
                  %s546 = sadd.s32 1, %s542
                $region102: #{_sd_hybrid_heads_jit.1} parent=95 // loop_footer_branch
                  %541 = sbr.rel target = $region98
                $region103: #{_sd_hybrid_heads_jit.1} parent=95 // loop_exit
                  _
              $region96: #{_sd_hybrid_heads_jit.1} parent=80 // pred_fallthru
                _
            $region81: #{_sd_hybrid_heads_jit.1} parent=76 // pred_fallthru
              _
            // Predicated region
            $region82: #{_sd_hybrid_heads_jit.1} parent=76 // pred_check
              _
            $region83: #{_sd_hybrid_heads_jit.1} parent=76 // pred_check_branch
              %522 = sbr.rel (0) target = $region85
            $region84: #{_sd_hybrid_heads_jit.1} parent=76 // pred_region
              loop: start=0, step=1, limit=1
              $region86: #{_sd_hybrid_heads_jit.1} parent=84 // loop_pre_header
                _
              $region87: #{_sd_hybrid_heads_jit.1} parent=84 // loop_header
                %s525 = sphi 0, %s529
                %p526 = scmp.ge.s32.totalorder %s525, 1
                %s530 = sphi %s516, %s516
                %s531 = sphi %s515, %s515
              $region88: #{_sd_hybrid_heads_jit.1} parent=84 // loop_header_branch
                %528 = sbr.rel (%p526) target = $region92
              $region89: #{_sd_hybrid_heads_jit.1} parent=84 // loop_body
                %v532 = vld [vmem:[%s530] sm:$0x1]
                %533 = vst [vmem:[%s531] sm:$0x1] %v532
                %v534 = vld [vmem:[%s530 + $0x2] sm:$0x1]
                %535 = vst [vmem:[%s531 + $0x1] sm:$0x1] %v534
                %v536 = vld [vmem:[%s530 + $0x4] sm:$0x1]
                %537 = vst [vmem:[%s531 + $0x2] sm:$0x1] %v536
              $region90: #{_sd_hybrid_heads_jit.1} parent=84 // loop_footer
                %s529 = sadd.s32 1, %s525
              $region91: #{_sd_hybrid_heads_jit.1} parent=84 // loop_footer_branch
                %524 = sbr.rel target = $region87
              $region92: #{_sd_hybrid_heads_jit.1} parent=84 // loop_exit
                _
            $region85: #{_sd_hybrid_heads_jit.1} parent=76 // pred_fallthru
              _
          $region77: #{_sd_hybrid_heads_jit.1} parent=72 // pred_fallthru
            _
          %555 = vnop
        $region73: #{_sd_hybrid_heads_jit.1} parent=27 // pred_fallthru
          _
        // Predicated region
        $region104: #{_sd_hybrid_heads_jit.1} parent=27 // pred_check
          %p556 = pneg %p139
        $region105: #{_sd_hybrid_heads_jit.1} parent=27 // pred_check_branch
          %558 = sbr.rel (%p556) target = $region107
        $region106: #{_sd_hybrid_heads_jit.1} parent=27 // pred_region
          %s559 = smul.u32 16, %s25
          %p560 = scmp.lt.s32.totalorder %s559, 31
          %s561 = scalar_select %p560, %s559, 31
          %s562 = smul.addr %s561, 4
          %s563 = scalar_lea.vmem %s5, %s562
          %s564 = smul.u32 16, %s25
        $region107: #{_sd_hybrid_heads_jit.1} parent=27 // pred_fallthru
          _
        // Predicated region
        $region108: #{_sd_hybrid_heads_jit.1} parent=27 // pred_check
          %p565 = pneg %p165
        $region109: #{_sd_hybrid_heads_jit.1} parent=27 // pred_check_branch
          %567 = sbr.rel (%p565) target = $region111
        $region110: #{_sd_hybrid_heads_jit.1} parent=27 // pred_region
          %p568 = scmp.lt.s32.totalorder %s25, 1
          %s569 = scalar_select %p568, %s25, 1
          %s570 = scalar_lea.vmem %s6, %s569
        $region111: #{_sd_hybrid_heads_jit.1} parent=27 // pred_fallthru
          _
      $region28: #{_sd_hybrid_heads_jit.1} parent=5 // pred_fallthru
        _
      %p571 = scmp.le.s32.totalorder 1, %s25
      %p572 = scmp.lt.s32.totalorder %s25, 3
      %p573 = pnand %p571, %p572
      %p574 = pneg %p573
      // Predicated region
      $region112: #{_sd_hybrid_heads_jit.1} parent=5 // pred_check
        _
      $region113: #{_sd_hybrid_heads_jit.1} parent=5 // pred_check_branch
        %576 = sbr.rel (%p573) target = $region115
      $region114: #{_sd_hybrid_heads_jit.1} parent=5 // pred_region
        %s577 = ssub.s32 %s25, 1
        %s578 = sand.u32 %s59, 1
        %s579 = sand.u32 %s59, 1
        %s580 = smul.addr %s579, 192
        %s581 = scalar_lea.vmem [#allocation4], %s580
        // Predicated region
        $region116: #{_sd_hybrid_heads_jit.1} parent=114 // pred_check
          %p582 = pneg %p72
        $region117: #{_sd_hybrid_heads_jit.1} parent=114 // pred_check_branch
          %584 = sbr.rel (%p582) target = $region119
        $region118: #{_sd_hybrid_heads_jit.1} parent=114 // pred_region
          _
        $region119: #{_sd_hybrid_heads_jit.1} parent=114 // pred_fallthru
          _
        %s585 = sand.u32 %s85, 1
        %s586 = sand.u32 %s85, 1
        %s587 = smul.addr %s586, 3
        %s588 = scalar_lea.vmem [#allocation5], %s587
        // Predicated region
        $region120: #{_sd_hybrid_heads_jit.1} parent=114 // pred_check
          %p589 = pneg %p98
        $region121: #{_sd_hybrid_heads_jit.1} parent=114 // pred_check_branch
          %591 = sbr.rel (%p589) target = $region123
        $region122: #{_sd_hybrid_heads_jit.1} parent=114 // pred_region
          _
        $region123: #{_sd_hybrid_heads_jit.1} parent=114 // pred_fallthru
          _
        %p592 = pneg %p46
        %p593 = pneg %p43
        %s594 = sand.u32 %s59, 1
        %s595 = sand.u32 %s59, 1
        %s596 = smul.addr %s595, 192
        %s597 = scalar_lea.vmem [#allocation4], %s596
        %p598 = pneg %p72
        %p599 = pneg %p69
        %s600 = sand.u32 %s85, 1
        %s601 = sand.u32 %s85, 1
        %s602 = smul.addr %s601, 3
        %s603 = scalar_lea.vmem [#allocation5], %s602
        %p604 = pneg %p98
        %p605 = pneg %p95
        %p606 = pneg %p119
        %p607 = pneg %p116
        %s608 = smul.u32 16, %s30
        %p609 = scmp.lt.s32.totalorder %s608, 31
        %s610 = scalar_select %p609, %s608, 31
        %s611 = smul.addr %s610, 4
        %s612 = scalar_lea.vmem %s5, %s611
        %p613 = pneg %p145
        %p614 = pneg %p142
        %p615 = scmp.lt.s32.totalorder %s30, 1
        %s616 = scalar_select %p615, %s30, 1
        %s617 = scalar_lea.vmem %s6, %s616
        %p618 = pneg %p171
        %p619 = pneg %p168
        %p620 = pneg %p192
        %p621 = pneg %p189
        %p622 = pneg %p218
        %p623 = pneg %p215
        %s624 = sand.u32 %s205, 1
        %s625 = sand.u32 %s205, 1
        %s626 = smul.addr %s625, 24
        %s627 = scalar_lea.vmem [#allocation6], %s626
        %p628 = pneg %p244
        %p629 = pneg %p241
        %s630 = sand.u32 %s231, 1
        %s631 = scalar_lea.sflag [#allocation8], %s630
        %s632 = sand.u32 %s231, 1
        %s633 = smul.addr %s632, 8
        %s634 = scalar_lea.vmem [#allocation7], %s633
        %s635 = smul.u32 16, %s30
        %s636 = smul.u32 16, %s30
        %p637 = scmp.lt.s32.totalorder %s636, 31
        %s638 = scalar_select %p637, %s636, 31
        %s639 = smul.addr %s638, 4
        %s640 = scalar_lea.vmem %s5, %s639
        %s641 = smul.u32 16, %s30
        %p642 = scmp.lt.s32.totalorder %s30, 1
        %s643 = scalar_select %p642, %s30, 1
        %s644 = scalar_lea.vmem %s6, %s643
        %v646 = vld [vmem:[%s1] sm:$0xf]
        %v647 = vld [vmem:[%s1 + $0x4] sm:$0xf]
        %v648 = vld [vmem:[%s1 + $0x8] sm:$0xf]
        %v649 = vld [vmem:[%s581] sm:$0xf]
        %v650 = vld [vmem:[%s581 + $0x4] sm:$0xf]
        %v651 = vld [vmem:[%s581 + $0x8] sm:$0xf]
        %v652 = vld [vmem:[%s581 + $0xc] sm:$0xf]
        %v653 = vld [vmem:[%s581 + $0x10] sm:$0xf]
        %v654 = vld [vmem:[%s581 + $0x14] sm:$0xf]
        %v655 = vld [vmem:[%s581 + $0x18] sm:$0xf]
        %v656 = vld [vmem:[%s581 + $0x1c] sm:$0xf]
        %v657 = vld [vmem:[%s581 + $0x20] sm:$0xf]
        %v658 = vld [vmem:[%s581 + $0x24] sm:$0xf]
        %v659 = vld [vmem:[%s581 + $0x28] sm:$0xf]
        %v660 = vld [vmem:[%s581 + $0x2c] sm:$0xf]
        %v661 = vld [vmem:[%s581 + $0x30] sm:$0xf]
        %v662 = vld [vmem:[%s581 + $0x34] sm:$0xf]
        %v663 = vld [vmem:[%s581 + $0x38] sm:$0xf]
        %v664 = vld [vmem:[%s581 + $0x3c] sm:$0xf]
        %v665 = vld [vmem:[%s581 + $0x40] sm:$0xf]
        %v666 = vld [vmem:[%s581 + $0x44] sm:$0xf]
        %v667 = vld [vmem:[%s581 + $0x48] sm:$0xf]
        %v668 = vld [vmem:[%s581 + $0x4c] sm:$0xf]
        %v669 = vld [vmem:[%s581 + $0x50] sm:$0xf]
        %v670 = vld [vmem:[%s581 + $0x54] sm:$0xf]
        %v671 = vld [vmem:[%s581 + $0x58] sm:$0xf]
        %v672 = vld [vmem:[%s581 + $0x5c] sm:$0xf]
        %v673 = vld [vmem:[%s581 + $0x60] sm:$0xf]
        %v674 = vld [vmem:[%s581 + $0x64] sm:$0xf]
        %v675 = vld [vmem:[%s581 + $0x68] sm:$0xf]
        %v676 = vld [vmem:[%s581 + $0x6c] sm:$0xf]
        %v677 = vld [vmem:[%s581 + $0x70] sm:$0xf]
        %v678 = vld [vmem:[%s581 + $0x74] sm:$0xf]
        %v679 = vld [vmem:[%s581 + $0x78] sm:$0xf]
        %v680 = vld [vmem:[%s581 + $0x7c] sm:$0xf]
        %v681 = vld [vmem:[%s581 + $0x80] sm:$0xf]
        %v682 = vld [vmem:[%s581 + $0x84] sm:$0xf]
        %v683 = vld [vmem:[%s581 + $0x88] sm:$0xf]
        %v684 = vld [vmem:[%s581 + $0x8c] sm:$0xf]
        %v685 = vld [vmem:[%s581 + $0x90] sm:$0xf]
        %v686 = vld [vmem:[%s581 + $0x94] sm:$0xf]
        %v687 = vld [vmem:[%s581 + $0x98] sm:$0xf]
        %v688 = vld [vmem:[%s581 + $0x9c] sm:$0xf]
        %v689 = vld [vmem:[%s581 + $0xa0] sm:$0xf]
        %v690 = vld [vmem:[%s581 + $0xa4] sm:$0xf]
        %v691 = vld [vmem:[%s581 + $0xa8] sm:$0xf]
        %v692 = vld [vmem:[%s581 + $0xac] sm:$0xf]
        %v693 = vld [vmem:[%s581 + $0xb0] sm:$0xf]
        %v694 = vld [vmem:[%s581 + $0xb4] sm:$0xf]
        %v695 = vld [vmem:[%s581 + $0xb8] sm:$0xf]
        %v696 = vld [vmem:[%s581 + $0xbc] sm:$0xf]
        %v697 = vld [vmem:[%s588] sm:$0x1]
        %v698 = vld [vmem:[%s588 + $0x1] sm:$0x1]
        %v699 = vld [vmem:[%s588 + $0x2] sm:$0x1]
        %v703 = vlaneseq
        %v704 = vshrl.u32 %v703, 7
        %v705 = vsub.s32 0, %v704
        %v706 = vrot.slane %v697, %v705
        %v707 = vlaneseq
        %v708 = vshrl.u32 %v707, 7
        %v709 = vsub.s32 0, %v708
        %v710 = vrot.slane %v698, %v709
        %v711 = vlaneseq
        %v712 = vshrl.u32 %v711, 7
        %v713 = vsub.s32 0, %v712
        %v714 = vrot.slane %v699, %v713
        %v734 = vunpack.c.l.b16 %v649
        %v735 = vunpack.c.l.b16 %v650
        %v736 = vunpack.c.l.b16 %v651
        %v737 = vunpack.c.l.b16 %v652
        %v738 = vunpack.c.l.b16 %v653
        %v739 = vunpack.c.l.b16 %v654
        %v740 = vunpack.c.l.b16 %v655
        %v741 = vunpack.c.l.b16 %v656
        %v742 = vunpack.c.l.b16 %v657
        %v743 = vunpack.c.l.b16 %v658
        %v744 = vunpack.c.l.b16 %v659
        %v745 = vunpack.c.l.b16 %v660
        %v746 = vunpack.c.l.b16 %v661
        %v747 = vunpack.c.l.b16 %v662
        %v748 = vunpack.c.l.b16 %v663
        %v749 = vunpack.c.l.b16 %v664
        %v750 = vpack.c.b16 %v735, %v734
        %v751 = vpack.c.b16 %v737, %v736
        %v752 = vpack.c.b16 %v739, %v738
        %v753 = vpack.c.b16 %v741, %v740
        %v754 = vpack.c.b16 %v743, %v742
        %v755 = vpack.c.b16 %v745, %v744
        %v756 = vpack.c.b16 %v747, %v746
        %v757 = vpack.c.b16 %v749, %v748
        %766 = vmatprep.subr.bf16.mxu0 0
        %767 = vmatpush1.bf16.xpose.msra.mxu0 %v750
        %768 = vmatprep.subr.bf16.mxu0 0
        %769 = vmatpush1.bf16.xpose.msra.mxu0 %v751
        %770 = vmatprep.subr.bf16.mxu0 0
        %771 = vmatpush1.bf16.xpose.msra.mxu0 %v752
        %772 = vmatprep.subr.bf16.mxu0 0
        %773 = vmatpush1.bf16.xpose.msra.mxu0 %v753
        %774 = vmatprep.subr.bf16.mxu0 0
        %775 = vmatpush1.bf16.xpose.msra.mxu0 %v754
        %776 = vmatprep.subr.bf16.mxu0 0
        %777 = vmatpush1.bf16.xpose.msra.mxu0 %v755
        %778 = vmatprep.subr.bf16.mxu0 0
        %779 = vmatpush1.bf16.xpose.msra.mxu0 %v756
        %780 = vmatprep.subr.bf16.mxu0 0
        %781 = vmatpush1.bf16.xpose.msra.mxu0 %v757
        %782 = vmatprep.subr.bf16.mxu0 0
        %783 = vmatpush1.bf16.xpose.msra.mxu0 0
        %784 = vmatprep.subr.bf16.mxu0 0
        %785 = vmatpush1.bf16.xpose.msra.mxu0 0
        %786 = vmatprep.subr.bf16.mxu0 0
        %787 = vmatpush1.bf16.xpose.msra.mxu0 0
        %788 = vmatprep.subr.bf16.mxu0 0
        %789 = vmatpush1.bf16.xpose.msra.mxu0 0
        %790 = vmatprep.subr.bf16.mxu0 0
        %791 = vmatpush1.bf16.xpose.msra.mxu0 0
        %792 = vmatprep.subr.bf16.mxu0 0
        %793 = vmatpush1.bf16.xpose.msra.mxu0 0
        %794 = vmatprep.subr.bf16.mxu0 0
        %795 = vmatpush1.bf16.xpose.msra.mxu0 0
        %796 = vmatprep.subr.bf16.mxu0 0
        %797 = vmatpush1.bf16.xpose.msra.mxu0 0
        %798 = vmatprep.mubr.bf16.mxu0 0
        %799 = vmatmul.mubr.bf16.gmra.mrb[0].mxu0 %v646
        %v800 = vpop.f32.mrb[0].mxu0
        %v801 = vadd.f32 %v706, %v800
        %v802 = vpop.f32.mrb[0].mxu0
        %v803 = vpop.f32.mrb[0].mxu0
        %v804 = vpop.f32.mrb[0].mxu0
        %805 = vdwg.mxu0
        %v822 = vunpack.c.l.b16 %v665
        %v823 = vunpack.c.l.b16 %v666
        %v824 = vunpack.c.l.b16 %v667
        %v825 = vunpack.c.l.b16 %v668
        %v826 = vunpack.c.l.b16 %v669
        %v827 = vunpack.c.l.b16 %v670
        %v828 = vunpack.c.l.b16 %v671
        %v829 = vunpack.c.l.b16 %v672
        %v830 = vunpack.c.l.b16 %v673
        %v831 = vunpack.c.l.b16 %v674
        %v832 = vunpack.c.l.b16 %v675
        %v833 = vunpack.c.l.b16 %v676
        %v834 = vunpack.c.l.b16 %v677
        %v835 = vunpack.c.l.b16 %v678
        %v836 = vunpack.c.l.b16 %v679
        %v837 = vunpack.c.l.b16 %v680
        %v838 = vpack.c.b16 %v823, %v822
        %v839 = vpack.c.b16 %v825, %v824
        %v840 = vpack.c.b16 %v827, %v826
        %v841 = vpack.c.b16 %v829, %v828
        %v842 = vpack.c.b16 %v831, %v830
        %v843 = vpack.c.b16 %v833, %v832
        %v844 = vpack.c.b16 %v835, %v834
        %v845 = vpack.c.b16 %v837, %v836
        %854 = vmatprep.subr.bf16.mxu0 0
        %855 = vmatpush1.bf16.xpose.msra.mxu0 %v838
        %856 = vmatprep.subr.bf16.mxu0 0
        %857 = vmatpush1.bf16.xpose.msra.mxu0 %v839
        %858 = vmatprep.subr.bf16.mxu0 0
        %859 = vmatpush1.bf16.xpose.msra.mxu0 %v840
        %860 = vmatprep.subr.bf16.mxu0 0
        %861 = vmatpush1.bf16.xpose.msra.mxu0 %v841
        %862 = vmatprep.subr.bf16.mxu0 0
        %863 = vmatpush1.bf16.xpose.msra.mxu0 %v842
        %864 = vmatprep.subr.bf16.mxu0 0
        %865 = vmatpush1.bf16.xpose.msra.mxu0 %v843
        %866 = vmatprep.subr.bf16.mxu0 0
        %867 = vmatpush1.bf16.xpose.msra.mxu0 %v844
        %868 = vmatprep.subr.bf16.mxu0 0
        %869 = vmatpush1.bf16.xpose.msra.mxu0 %v845
        %870 = vmatprep.subr.bf16.mxu0 0
        %871 = vmatpush1.bf16.xpose.msra.mxu0 0
        %872 = vmatprep.subr.bf16.mxu0 0
        %873 = vmatpush1.bf16.xpose.msra.mxu0 0
        %874 = vmatprep.subr.bf16.mxu0 0
        %875 = vmatpush1.bf16.xpose.msra.mxu0 0
        %876 = vmatprep.subr.bf16.mxu0 0
        %877 = vmatpush1.bf16.xpose.msra.mxu0 0
        %878 = vmatprep.subr.bf16.mxu0 0
        %879 = vmatpush1.bf16.xpose.msra.mxu0 0
        %880 = vmatprep.subr.bf16.mxu0 0
        %881 = vmatpush1.bf16.xpose.msra.mxu0 0
        %882 = vmatprep.subr.bf16.mxu0 0
        %883 = vmatpush1.bf16.xpose.msra.mxu0 0
        %884 = vmatprep.subr.bf16.mxu0 0
        %885 = vmatpush1.bf16.xpose.msra.mxu0 0
        %886 = vmatprep.mubr.bf16.mxu0 0
        %887 = vmatmul.mubr.bf16.gmra.mrb[0].mxu0 %v647
        %v888 = vpop.f32.mrb[0].mxu0
        %v889 = vadd.f32 %v710, %v888
        %v890 = vpop.f32.mrb[0].mxu0
        %v891 = vpop.f32.mrb[0].mxu0
        %v892 = vpop.f32.mrb[0].mxu0
        %893 = vdwg.mxu0
        %v910 = vunpack.c.l.b16 %v681
        %v911 = vunpack.c.l.b16 %v682
        %v912 = vunpack.c.l.b16 %v683
        %v913 = vunpack.c.l.b16 %v684
        %v914 = vunpack.c.l.b16 %v685
        %v915 = vunpack.c.l.b16 %v686
        %v916 = vunpack.c.l.b16 %v687
        %v917 = vunpack.c.l.b16 %v688
        %v918 = vunpack.c.l.b16 %v689
        %v919 = vunpack.c.l.b16 %v690
        %v920 = vunpack.c.l.b16 %v691
        %v921 = vunpack.c.l.b16 %v692
        %v922 = vunpack.c.l.b16 %v693
        %v923 = vunpack.c.l.b16 %v694
        %v924 = vunpack.c.l.b16 %v695
        %v925 = vunpack.c.l.b16 %v696
        %v926 = vpack.c.b16 %v911, %v910
        %v927 = vpack.c.b16 %v913, %v912
        %v928 = vpack.c.b16 %v915, %v914
        %v929 = vpack.c.b16 %v917, %v916
        %v930 = vpack.c.b16 %v919, %v918
        %v931 = vpack.c.b16 %v921, %v920
        %v932 = vpack.c.b16 %v923, %v922
        %v933 = vpack.c.b16 %v925, %v924
        %942 = vmatprep.subr.bf16.mxu0 0
        %943 = vmatpush1.bf16.xpose.msra.mxu0 %v926
        %944 = vmatprep.subr.bf16.mxu0 0
        %945 = vmatpush1.bf16.xpose.msra.mxu0 %v927
        %946 = vmatprep.subr.bf16.mxu0 0
        %947 = vmatpush1.bf16.xpose.msra.mxu0 %v928
        %948 = vmatprep.subr.bf16.mxu0 0
        %949 = vmatpush1.bf16.xpose.msra.mxu0 %v929
        %950 = vmatprep.subr.bf16.mxu0 0
        %951 = vmatpush1.bf16.xpose.msra.mxu0 %v930
        %952 = vmatprep.subr.bf16.mxu0 0
        %953 = vmatpush1.bf16.xpose.msra.mxu0 %v931
        %954 = vmatprep.subr.bf16.mxu0 0
        %955 = vmatpush1.bf16.xpose.msra.mxu0 %v932
        %956 = vmatprep.subr.bf16.mxu0 0
        %957 = vmatpush1.bf16.xpose.msra.mxu0 %v933
        %958 = vmatprep.subr.bf16.mxu0 0
        %959 = vmatpush1.bf16.xpose.msra.mxu0 0
        %960 = vmatprep.subr.bf16.mxu0 0
        %961 = vmatpush1.bf16.xpose.msra.mxu0 0
        %962 = vmatprep.subr.bf16.mxu0 0
        %963 = vmatpush1.bf16.xpose.msra.mxu0 0
        %964 = vmatprep.subr.bf16.mxu0 0
        %965 = vmatpush1.bf16.xpose.msra.mxu0 0
        %966 = vmatprep.subr.bf16.mxu0 0
        %967 = vmatpush1.bf16.xpose.msra.mxu0 0
        %968 = vmatprep.subr.bf16.mxu0 0
        %969 = vmatpush1.bf16.xpose.msra.mxu0 0
        %970 = vmatprep.subr.bf16.mxu0 0
        %971 = vmatpush1.bf16.xpose.msra.mxu0 0
        %972 = vmatprep.subr.bf16.mxu0 0
        %973 = vmatpush1.bf16.xpose.msra.mxu0 0
        %974 = vmatprep.mubr.bf16.mxu0 0
        %975 = vmatmul.mubr.bf16.gmra.mrb[0].mxu0 %v648
        %v976 = vpop.f32.mrb[0].mxu0
        %v977 = vadd.f32 %v714, %v976
        %v978 = vpop.f32.mrb[0].mxu0
        %v979 = vpop.f32.mrb[0].mxu0
        %v980 = vpop.f32.mrb[0].mxu0
        %981 = vdwg.mxu0
        %982 = vst [vmem:[%s627] sm:$0xff] %v801
        %983 = vst [vmem:[%s627 + $0x8] sm:$0xff] %v889
        %984 = vst [vmem:[%s627 + $0x10] sm:$0xff] %v977
        %v985 = vld [vmem:[%s4] sm:$0xf]
        %v986 = vld [vmem:[%s640] sm:$0xf]
        %v987 = vld [vmem:[%s640 + $0x4] sm:$0xf]
        %v988 = vld [vmem:[%s640 + $0x8] sm:$0xf]
        %v989 = vld [vmem:[%s640 + $0xc] sm:$0xf]
        %v990 = vld [vmem:[%s640 + $0x10] sm:$0xf]
        %v991 = vld [vmem:[%s640 + $0x14] sm:$0xf]
        %v992 = vld [vmem:[%s640 + $0x18] sm:$0xf]
        %v993 = vld [vmem:[%s640 + $0x1c] sm:$0xf]
        %v994 = vld [vmem:[%s640 + $0x20] sm:$0xf]
        %v995 = vld [vmem:[%s640 + $0x24] sm:$0xf]
        %v996 = vld [vmem:[%s640 + $0x28] sm:$0xf]
        %v997 = vld [vmem:[%s640 + $0x2c] sm:$0xf]
        %v998 = vld [vmem:[%s640 + $0x30] sm:$0xf]
        %v999 = vld [vmem:[%s640 + $0x34] sm:$0xf]
        %v1000 = vld [vmem:[%s640 + $0x38] sm:$0xf]
        %v1001 = vld [vmem:[%s640 + $0x3c] sm:$0xf]
        %v1018 = vunpack.c.l.b16 %v986
        %v1019 = vunpack.c.l.b16 %v987
        %v1020 = vunpack.c.l.b16 %v988
        %v1021 = vunpack.c.l.b16 %v989
        %v1022 = vunpack.c.l.b16 %v990
        %v1023 = vunpack.c.l.b16 %v991
        %v1024 = vunpack.c.l.b16 %v992
        %v1025 = vunpack.c.l.b16 %v993
        %v1026 = vunpack.c.l.b16 %v994
        %v1027 = vunpack.c.l.b16 %v995
        %v1028 = vunpack.c.l.b16 %v996
        %v1029 = vunpack.c.l.b16 %v997
        %v1030 = vunpack.c.l.b16 %v998
        %v1031 = vunpack.c.l.b16 %v999
        %v1032 = vunpack.c.l.b16 %v1000
        %v1033 = vunpack.c.l.b16 %v1001
        %v1034 = vpack.c.b16 %v1019, %v1018
        %v1035 = vpack.c.b16 %v1021, %v1020
        %v1036 = vpack.c.b16 %v1023, %v1022
        %v1037 = vpack.c.b16 %v1025, %v1024
        %v1038 = vpack.c.b16 %v1027, %v1026
        %v1039 = vpack.c.b16 %v1029, %v1028
        %v1040 = vpack.c.b16 %v1031, %v1030
        %v1041 = vpack.c.b16 %v1033, %v1032
        %1050 = vmatprep.subr.bf16.mxu0 0
        %1051 = vmatpush1.bf16.xpose.msra.mxu0 %v1034
        %1052 = vmatprep.subr.bf16.mxu0 0
        %1053 = vmatpush1.bf16.xpose.msra.mxu0 %v1035
        %1054 = vmatprep.subr.bf16.mxu0 0
        %1055 = vmatpush1.bf16.xpose.msra.mxu0 %v1036
        %1056 = vmatprep.subr.bf16.mxu0 0
        %1057 = vmatpush1.bf16.xpose.msra.mxu0 %v1037
        %1058 = vmatprep.subr.bf16.mxu0 0
        %1059 = vmatpush1.bf16.xpose.msra.mxu0 %v1038
        %1060 = vmatprep.subr.bf16.mxu0 0
        %1061 = vmatpush1.bf16.xpose.msra.mxu0 %v1039
        %1062 = vmatprep.subr.bf16.mxu0 0
        %1063 = vmatpush1.bf16.xpose.msra.mxu0 %v1040
        %1064 = vmatprep.subr.bf16.mxu0 0
        %1065 = vmatpush1.bf16.xpose.msra.mxu0 %v1041
        %1066 = vmatprep.subr.bf16.mxu0 0
        %1067 = vmatpush1.bf16.xpose.msra.mxu0 0
        %1068 = vmatprep.subr.bf16.mxu0 0
        %1069 = vmatpush1.bf16.xpose.msra.mxu0 0
        %1070 = vmatprep.subr.bf16.mxu0 0
        %1071 = vmatpush1.bf16.xpose.msra.mxu0 0
        %1072 = vmatprep.subr.bf16.mxu0 0
        %1073 = vmatpush1.bf16.xpose.msra.mxu0 0
        %1074 = vmatprep.subr.bf16.mxu0 0
        %1075 = vmatpush1.bf16.xpose.msra.mxu0 0
        %1076 = vmatprep.subr.bf16.mxu0 0
        %1077 = vmatpush1.bf16.xpose.msra.mxu0 0
        %1078 = vmatprep.subr.bf16.mxu0 0
        %1079 = vmatpush1.bf16.xpose.msra.mxu0 0
        %1080 = vmatprep.subr.bf16.mxu0 0
        %1081 = vmatpush1.bf16.xpose.msra.mxu0 0
        %1082 = vmatprep.mubr.bf16.mxu0 0
        %1083 = vmatmul.mubr.bf16.gmra.mrb[0].mxu0 %v985
        %v1084 = vpop.f32.mrb[0].mxu0
        %v1085 = vadd.f32 0.0, %v1084
        %v1086 = vpop.f32.mrb[0].mxu0
        %v1087 = vpop.f32.mrb[0].mxu0
        %v1088 = vpop.f32.mrb[0].mxu0
        %1089 = vdwg.mxu0
        %v1090 = vld [vmem:[%s644] sm:$0x1]
        %v1092 = vlaneseq
        %v1093 = vshrl.u32 %v1092, 7
        %v1094 = vsub.s32 0, %v1093
        %v1095 = vrot.slane %v1090, %v1094
        %v1097 = vmul.f32 %v1085, %v1095
        %s1098 = sld [smem:[#allocation3 + %s30]]
        %p1099 = scmp.gt.s32.totalorder %s1098, 0
        %p1100 = scmp.le.s32.totalorder %s1098, 0
        // Predicated region
        $region124: #{_sd_hybrid_heads_jit.1} parent=114 // pred_check
          %p1101 = pneg %p1100
        $region125: #{_sd_hybrid_heads_jit.1} parent=114 // pred_check_branch
          %1103 = sbr.rel (%p1101) target = $region127
        $region126: #{_sd_hybrid_heads_jit.1} parent=114 // pred_region
          %v1104 = vmul.f32 %v1097, 64.0
          %1105 = vst [vmem:[%s634] sm:$0xff] %v1104
        $region127: #{_sd_hybrid_heads_jit.1} parent=114 // pred_fallthru
          _
        // Predicated region
        $region128: #{_sd_hybrid_heads_jit.1} parent=114 // pred_check
          %p1106 = pneg %p1099
        $region129: #{_sd_hybrid_heads_jit.1} parent=114 // pred_check_branch
          %1108 = sbr.rel (%p1106) target = $region131
        $region130: #{_sd_hybrid_heads_jit.1} parent=114 // pred_region
          %v1109 = vmul.f32 %v1097, %v1097
          %v1110 = vsub.f32 1.0, %v1109
          %v1111 = vmax.f32 %v1110, 0.0
          %v1112 = vmin.f32 %v1111, 1.0
          %v1113 = vrsqrt.pop %v1112
          %v1114 = vmul.f32 %v1112, %v1113
          %vm1115 = vcmp.eq.f32.partialorder %v1112, inf
          %v1116 = vsel %vm1115, %v1112, %v1114
          %vm1117 = vcmp.eq.f32.partialorder %v1112, 0.0
          %v1118 = vand.u32 %v1112, 2147483648
          %v1119 = vsel %vm1117, %v1118, %v1116
          %v1120 = vmul.f32 %v1097, 0.87758255
          %v1121 = vmul.f32 %v1119, 0.47942555
          %v1122 = vsub.f32 %v1120, %v1121
          %vm1123 = vcmp.gt.f32.partialorder %v1097, -0.87758255
          %v1124 = vsub.f32 %v1097, 0.23971277
          %v1125 = vsel %vm1123, %v1122, %v1124
          %v1126 = vlaneseq
          %v1127 = vand.u32 %v1126, 127
          %s1128 = smul.u32 %s30, 128
          %v1129 = vstv %s1128
          %v1130 = vadd.s32 %v1127, %v1129
          %v1131 = vld [vmem:[%s7] sm:$0xff]
          %1132 = vset.pattern.permute.xlu0 0
          %1133 = vperm.xlu0 %1132, %v1131
          %v1134 = vpop.permute.xlu0 %1133
          %vm1135 = vcmp.eq.s32.totalorder %v1130, %v1134
          %v1136 = vsel %vm1135, %v1125, %v1097
          %v1137 = vmul.f32 %v1136, 64.0
          %1138 = vst [vmem:[%s634] sm:$0xff] %v1137
        $region131: #{_sd_hybrid_heads_jit.1} parent=114 // pred_fallthru
          _
        %s1139 = sand.u32 %s205, 1
        %s1140 = sand.u32 %s205, 1
        %s1141 = smul.addr %s1140, 24
        %s1142 = scalar_lea.vmem [#allocation6], %s1141
        %s1143 = sand.u32 %s231, 1
        %s1144 = scalar_lea.sflag [#allocation8], %s1143
        %s1145 = sand.u32 %s231, 1
        %s1146 = smul.addr %s1145, 8
        %s1147 = scalar_lea.vmem [#allocation7], %s1146
        // Predicated region
        $region132: #{_sd_hybrid_heads_jit.1} parent=114 // pred_check
          %p1148 = pneg %p215
        $region133: #{_sd_hybrid_heads_jit.1} parent=114 // pred_check_branch
          %1150 = sbr.rel (%p1148) target = $region135
        $region134: #{_sd_hybrid_heads_jit.1} parent=114 // pred_region
          %s1151 = smul.addr %s30, 8
          %s1152 = scalar_lea.vmem %s8, %s1151
          // Predicated region
          $region136: #{_sd_hybrid_heads_jit.1} parent=134 // pred_check
            _
          $region137: #{_sd_hybrid_heads_jit.1} parent=134 // pred_check_branch
            %1154 = sbr.rel (0) target = $region139
          $region138: #{_sd_hybrid_heads_jit.1} parent=134 // pred_region
            // Predicated region
            $region140: #{_sd_hybrid_heads_jit.1} parent=138 // pred_check
              _
            $region141: #{_sd_hybrid_heads_jit.1} parent=138 // pred_check_branch
              %1156 = sbr.rel (0) target = $region143
            $region142: #{_sd_hybrid_heads_jit.1} parent=138 // pred_region
              // Predicated region
              $region155: #{_sd_hybrid_heads_jit.1} parent=142 // pred_check
                _
              $region156: #{_sd_hybrid_heads_jit.1} parent=142 // pred_check_branch
                %1175 = sbr.rel (0) target = $region158
              $region157: #{_sd_hybrid_heads_jit.1} parent=142 // pred_region
                loop: start=0, step=1, limit=1
                $region159: #{_sd_hybrid_heads_jit.1} parent=157 // loop_pre_header
                  _
                $region160: #{_sd_hybrid_heads_jit.1} parent=157 // loop_header
                  %s1177 = sphi 0, %s1181
                  %p1178 = scmp.ge.s32.totalorder %s1177, 1
                  %s1182 = sphi %s1142, %s1142
                  %s1183 = sphi %s1152, %s1152
                $region161: #{_sd_hybrid_heads_jit.1} parent=157 // loop_header_branch
                  %1180 = sbr.rel (%p1178) target = $region165
                $region162: #{_sd_hybrid_heads_jit.1} parent=157 // loop_body
                  %v1184 = vld [vmem:[%s1182] sm:$0xff]
                  %1185 = vst [vmem:[%s1183] sm:$0xff] %v1184
                  %v1186 = vld [vmem:[%s1182 + $0x8] sm:$0xff]
                  %1187 = vst [vmem:[%s1183 + $0x10] sm:$0xff] %v1186
                  %v1188 = vld [vmem:[%s1182 + $0x10] sm:$0xff]
                  %1189 = vst [vmem:[%s1183 + $0x20] sm:$0xff] %v1188
                $region163: #{_sd_hybrid_heads_jit.1} parent=157 // loop_footer
                  %s1181 = sadd.s32 1, %s1177
                $region164: #{_sd_hybrid_heads_jit.1} parent=157 // loop_footer_branch
                  %1176 = sbr.rel target = $region160
                $region165: #{_sd_hybrid_heads_jit.1} parent=157 // loop_exit
                  _
              $region158: #{_sd_hybrid_heads_jit.1} parent=142 // pred_fallthru
                _
              // Predicated region
              $region166: #{_sd_hybrid_heads_jit.1} parent=142 // pred_check
                _
              $region167: #{_sd_hybrid_heads_jit.1} parent=142 // pred_check_branch
                %1191 = sbr.rel target = $region169
              $region168: #{_sd_hybrid_heads_jit.1} parent=142 // pred_region
                _
              $region169: #{_sd_hybrid_heads_jit.1} parent=142 // pred_fallthru
                _
            $region143: #{_sd_hybrid_heads_jit.1} parent=138 // pred_fallthru
              _
            // Predicated region
            $region144: #{_sd_hybrid_heads_jit.1} parent=138 // pred_check
              _
            $region145: #{_sd_hybrid_heads_jit.1} parent=138 // pred_check_branch
              %1158 = sbr.rel target = $region147
            $region146: #{_sd_hybrid_heads_jit.1} parent=138 // pred_region
              loop: start=0, step=1, limit=1
              $region148: #{_sd_hybrid_heads_jit.1} parent=146 // loop_pre_header
                _
              $region149: #{_sd_hybrid_heads_jit.1} parent=146 // loop_header
                %s1161 = sphi 0, %s1165
                %p1162 = scmp.ge.s32.totalorder %s1161, 1
                %s1166 = sphi %s1142, %s1142
                %s1167 = sphi %s1152, %s1152
              $region150: #{_sd_hybrid_heads_jit.1} parent=146 // loop_header_branch
                %1164 = sbr.rel (%p1162) target = $region154
              $region151: #{_sd_hybrid_heads_jit.1} parent=146 // loop_body
                %v1168 = vld [vmem:[%s1166] sm:$0xff]
                %1169 = vst [vmem:[%s1167] sm:$0xff] %v1168
                %v1170 = vld [vmem:[%s1166 + $0x8] sm:$0xff]
                %1171 = vst [vmem:[%s1167 + $0x10] sm:$0xff] %v1170
                %v1172 = vld [vmem:[%s1166 + $0x10] sm:$0xff]
                %1173 = vst [vmem:[%s1167 + $0x20] sm:$0xff] %v1172
              $region152: #{_sd_hybrid_heads_jit.1} parent=146 // loop_footer
                %s1165 = sadd.s32 1, %s1161
              $region153: #{_sd_hybrid_heads_jit.1} parent=146 // loop_footer_branch
                %1160 = sbr.rel target = $region149
              $region154: #{_sd_hybrid_heads_jit.1} parent=146 // loop_exit
                _
            $region147: #{_sd_hybrid_heads_jit.1} parent=138 // pred_fallthru
              _
          $region139: #{_sd_hybrid_heads_jit.1} parent=134 // pred_fallthru
            _
          %1192 = vnop
        $region135: #{_sd_hybrid_heads_jit.1} parent=114 // pred_fallthru
          _
        // Predicated region
        $region170: #{_sd_hybrid_heads_jit.1} parent=114 // pred_check
          %p1193 = pneg %p241
        $region171: #{_sd_hybrid_heads_jit.1} parent=114 // pred_check_branch
          %1195 = sbr.rel (%p1193) target = $region173
        $region172: #{_sd_hybrid_heads_jit.1} parent=114 // pred_region
          %s1197 = ssub.s32 128, 128
          %1198 = vsyncadd %s1144, %s1197
          %s1199 = smul.addr %s30, 128
          %s1200 = scalar_lea.hbm %s9, %s1199
          %s1202 = sshll.u32 %s1147, 4
          %s1203 = int_to_ptr.vmem [resolvable:$true] %s1202
          %1205 = dma.vmem_to_hbm [thread:$0]  %s1203, 128, %s1200, %s1144
        $region173: #{_sd_hybrid_heads_jit.1} parent=114 // pred_fallthru
          _
      $region115: #{_sd_hybrid_heads_jit.1} parent=5 // pred_fallthru
        _
      %p1206 = scmp.le.s32.totalorder 2, %s25
      // Predicated region
      $region174: #{_sd_hybrid_heads_jit.1} parent=5 // pred_check
        %p1207 = pneg %p1206
      $region175: #{_sd_hybrid_heads_jit.1} parent=5 // pred_check_branch
        %1209 = sbr.rel (%p1207) target = $region177
      $region176: #{_sd_hybrid_heads_jit.1} parent=5 // pred_region
        %s1210 = ssub.s32 %s25, 2
        // Predicated region
        $region178: #{_sd_hybrid_heads_jit.1} parent=176 // pred_check
          %p1211 = pneg %p221
        $region179: #{_sd_hybrid_heads_jit.1} parent=176 // pred_check_branch
          %1213 = sbr.rel (%p1211) target = $region181
        $region180: #{_sd_hybrid_heads_jit.1} parent=176 // pred_region
          %s1214 = sand.u32 %s206, 1
          %s1215 = sand.u32 %s206, 1
          %s1216 = smul.addr %s1215, 24
          %s1217 = scalar_lea.vmem [#allocation6], %s1216
        $region181: #{_sd_hybrid_heads_jit.1} parent=176 // pred_fallthru
          _
        // Predicated region
        $region182: #{_sd_hybrid_heads_jit.1} parent=176 // pred_check
          %p1218 = pneg %p247
        $region183: #{_sd_hybrid_heads_jit.1} parent=176 // pred_check_branch
          %1220 = sbr.rel (%p1218) target = $region185
        $region184: #{_sd_hybrid_heads_jit.1} parent=176 // pred_region
          %s1221 = sand.u32 %s232, 1
          %s1222 = scalar_lea.sflag [#allocation8], %s1221
          %s1223 = sand.u32 %s232, 1
          %s1224 = smul.addr %s1223, 8
          %s1225 = scalar_lea.vmem [#allocation7], %s1224
          %1226 = dma.done %s1222, 128
        $region185: #{_sd_hybrid_heads_jit.1} parent=176 // pred_fallthru
          _
      $region177: #{_sd_hybrid_heads_jit.1} parent=5 // pred_fallthru
        _
    $region6: #{_sd_hybrid_heads_jit.1} parent=1 // loop_footer
      %s29 = sadd.s32 1, %s25
    $region7: #{_sd_hybrid_heads_jit.1} parent=1 // loop_footer_branch
      %24 = sbr.rel target = $region3
    $region8: #{_sd_hybrid_heads_jit.1} parent=1 // loop_exit
      _
    %1227 = vsyncpa [#allocation8], 1
    %s1228 = scalar_lea.sflag [#allocation8], 1
    %1229 = vsyncpa %s1228, 1

</llo_original>
